<compile_context>
chip_gen: v6e
topology: v6e:2x2x1
jax: 0.10.0
libtpu: 0.0.40
codegen_flags: <defaults>
</compile_context>

<pallas_src>
import numpy as np
import jax
import jax.numpy as jnp
from jax.experimental import pallas as pl
from jax.experimental.pallas import tpu as pltpu


def _round_up(x, m):
    return -(-x // m) * m


# ----------------------------------------------------------------------------
# Kernel body
# ----------------------------------------------------------------------------
def _make_kernel(num_blocks, res_depth, input_dim, width, half):
    def kernel(uti_ref, ass_ref, w1_ref, w2_ref, b1_ref, b2_ref,
               wf_ref, bf_ref, out_ref):
        # Batch-major (tb, half) tiles -> feature-major (half, tb) on the XLU.
        uti_t = uti_ref[...].T                        # (half, tb) f32
        ass_t = ass_ref[...].T                        # (half, tb) f32
        # torch.cat((uti, ass), dim=1): features live on sublanes here.
        x = jnp.concatenate([uti_t, ass_t], axis=0)   # (input_dim, tb) f32

        li = 0
        for _ in range(num_blocks):                   # Sequential of resBlock
            y = x
            for _ in range(res_depth):                # [Linear, ReLU, Linear] * depth
                w1 = w1_ref[li]                       # (width, input_dim) bf16
                b1 = b1_ref[:, li:li + 1]             # (width, 1) f32
                w2 = w2_ref[li]                       # (input_dim, width) bf16
                b2 = b2_ref[:, li:li + 1]             # (input_dim, 1) f32
                li += 1
                h = jnp.dot(w1, y.astype(jnp.bfloat16),
                            preferred_element_type=jnp.float32) + b1
                h = jnp.maximum(h, 0.0)               # ReLU in f32
                y = jnp.dot(w2, h.astype(jnp.bfloat16),
                            preferred_element_type=jnp.float32) + b2
            x = x + y                                 # identity shortcut

        # final_layer + .mul(ass)
        score = jnp.dot(wf_ref[...], x.astype(jnp.bfloat16),
                        preferred_element_type=jnp.float32) + bf_ref[...]
        score = score * ass_t
        # score[score == 0] = -1e20  (exact zeros from ass==0 are exact here too;
        # borderline non-zeros may differ from fp32 torch due to bf16 matmuls)
        score = jnp.where(score == 0.0, jnp.float32(-1e20), score)
        out_ref[...] = score.astype(out_ref.dtype)    # (half, tb), lane-dense

    return kernel


# ----------------------------------------------------------------------------
# One-time host-side parameter packing (numpy; reuse the result across calls)
# ----------------------------------------------------------------------------
def pack_res_assort_params(weights, biases, *, num_blocks, res_depth):
    """weights/biases in PyTorch layout: W (out, in), b (out,), ordered
    [W1, W2] * (num_blocks * res_depth) + [W_final]."""
    n_pairs = num_blocks * res_depth
    n_w = 2 * n_pairs + 1
    assert len(weights) == n_w and len(biases) == n_w
    width, input_dim = (int(s) for s in np.shape(weights[0]))
    half = input_dim // 2
    assert tuple(np.shape(weights[-1])) == (half, input_dim)

    w1 = np.zeros((n_pairs, width, input_dim), np.float32)
    w2 = np.zeros((n_pairs, input_dim, width), np.float32)
    b1 = np.zeros((width, n_pairs), np.float32)       # feature-on-sublane biases
    b2 = np.zeros((input_dim, n_pairs), np.float32)
    for k in range(n_pairs):
        w1[k] = np.asarray(weights[2 * k], np.float32)
        b1[:, k] = np.asarray(biases[2 * k], np.float32)
        w2[k] = np.asarray(weights[2 * k + 1], np.float32)
        b2[:, k] = np.asarray(biases[2 * k + 1], np.float32)
    wf = np.asarray(weights[-1], np.float32)
    bf = np.asarray(biases[-1], np.float32).reshape(half, 1)

    return {
        "w1": jnp.asarray(w1, jnp.bfloat16),          # bf16 operands -> MXU fast path
        "w2": jnp.asarray(w2, jnp.bfloat16),
        "wf": jnp.asarray(wf, jnp.bfloat16),
        "b1": jnp.asarray(b1),                        # f32 biases
        "b2": jnp.asarray(b2),
        "bf": jnp.asarray(bf),
        "num_blocks": int(num_blocks),
        "res_depth": int(res_depth),
        "width": width,
        "input_dim": input_dim,
        "half": half,
    }


# ----------------------------------------------------------------------------
# Forward wrapper
# ----------------------------------------------------------------------------
_VMEM_BUDGET = 40 * 1024 * 1024   # conservative working-set budget (fits v7x 64 MiB)


def res_assort_net_forward(uti, ass, params, *, block_batch=4096):
    """Res_Assort_Net forward.  uti, ass: (B, input_dim // 2) float32.
    `params` is the dict returned by pack_res_assort_params (pack once, reuse)."""
    uti = jnp.asarray(uti, jnp.float32)
    ass = jnp.asarray(ass, jnp.float32)
    B, half = uti.shape
    assert ass.shape == (B, half) and half == params["half"]
    input_dim = params["input_dim"]
    width = params["width"]
    num_blocks = params["num_blocks"]
    res_depth = params["res_depth"]
    n_pairs = num_blocks * res_depth

    w1, w2, wf = params["w1"], params["w2"], params["wf"]
    b1, b2, bf = params["b1"], params["b2"], params["bf"]

    # VMEM accounting (param slabs counted double-buffered to stay conservative).
    param_bytes = 2 * (w1.size + w2.size + wf.size) * 2 \
        + 2 * (_round_up(width, 8) + _round_up(input_dim, 8) + 8) * 128 * 4

    def vmem_estimate(tb):
        in_tiles = 2 * 2 * tb * _round_up(half, 128) * 4   # uti/ass tiles, dbl-buffered
        out_tiles = 2 * _round_up(half, 8) * tb * 4
        acts = 4 * (input_dim + width) * tb * 4             # x, y, h + temporaries
        return param_bytes + in_tiles + out_tiles + acts

    # ---- batch tiling: lane-dense (multiple-of-128) tiles, >=2 grid steps when
    #      B allows, tile shrinks if the VMEM estimate exceeds the budget ------
    block_batch = _round_up(max(128, int(block_batch)), 128)
    tb = min(block_batch, max(128, _round_up(-(-B // 2), 128)))
    while tb > 128 and vmem_estimate(tb) > _VMEM_BUDGET:
        tb = max(128, _round_up(tb // 2, 128))
    b_pad = _round_up(B, tb)
    if b_pad != B:
        uti = jnp.pad(uti, ((0, b_pad - B), (0, 0)))
        ass = jnp.pad(ass, ((0, b_pad - B), (0, 0)))
    grid = (b_pad // tb,)

    vmem_limit = int(min(48 * 1024 * 1024,
                         max(32 * 1024 * 1024, 1.5 * vmem_estimate(tb))))

    kernel = _make_kernel(num_blocks, res_depth, input_dim, width, half)

    flops_per_row = 2 * (2 * n_pairs * width * input_dim + half * input_dim)
    cost = pl.CostEstimate(
        flops=int(flops_per_row * b_pad),
        transcendentals=0,
        bytes_accessed=int((2 * b_pad * half + half * b_pad) * 4
                           + (w1.size + w2.size + wf.size) * 2
                           + (b1.size + b2.size + bf.size) * 4),
    )

    def build(single_buffer_params):
        def const_spec(shape):
            nd = len(shape)
            idx = lambda i, _nd=nd: (0,) * _nd        # noqa: E731 (grid-invariant)
            if single_buffer_params:
                return pl.BlockSpec(shape, idx, pipeline_mode=pl.Buffered(1))
            return pl.BlockSpec(shape, idx)

        return pl.pallas_call(
            kernel,
            out_shape=jax.ShapeDtypeStruct((half, b_pad), jnp.float32),
            grid=grid,
            in_specs=[
                pl.BlockSpec((tb, half), lambda i: (i, 0)),   # uti (batch-major)
                pl.BlockSpec((tb, half), lambda i: (i, 0)),   # ass (batch-major)
                const_spec((n_pairs, width, input_dim)),      # W1 slab (bf16)
                const_spec((n_pairs, input_dim, width)),      # W2 slab (bf16)
                const_spec((width, n_pairs)),                 # b1 slab (f32)
                const_spec((input_dim, n_pairs)),             # b2 slab (f32)
                const_spec((half, input_dim)),                # final W (bf16)
                const_spec((half, 1)),                        # final b (f32)
            ],
            out_specs=pl.BlockSpec((half, tb), lambda i: (0, i)),  # lane-dense out
            compiler_params=pltpu.CompilerParams(
                dimension_semantics=("parallel",),
                vmem_limit_bytes=vmem_limit),
            cost_estimate=cost,
        )

    args = (uti, ass, w1, w2, b1, b2, wf, bf)
    try:
        # Grid-invariant parameter slabs: fetch once, single VMEM buffer
        # (halves parameter VMEM; matters on v7x's 64 MiB).
        out_t = build(single_buffer_params=True)(*args)
    except Exception:
        # Fallback for JAX versions without pipeline_mode support here: constant
        # index_maps still make the slabs fetch-once (just double-buffered).
        out_t = build(single_buffer_params=False)(*args)

    # Output is produced feature-major / lane-dense; one small relayout restores
    # the PyTorch (B, half) convention.
    return out_t[:, :B].T


# ----------------------------------------------------------------------------
# Pure-JAX f32 reference of the PyTorch forward (for testing)
# ----------------------------------------------------------------------------
def res_assort_net_reference(uti, ass, weights, biases, *, num_blocks, res_depth):
    x = jnp.concatenate([uti, ass], axis=1)
    li = 0
    for _ in range(num_blocks):
        y = x
        for _ in range(res_depth):
            w1, b1 = weights[li], biases[li]
            w2, b2 = weights[li + 1], biases[li + 1]
            li += 2
            y = jnp.maximum(y @ w1.T + b1, 0.0) @ w2.T + b2
        x = x + y
    wf, bf = weights[-1], biases[-1]
    score = (x @ wf.T + bf) * ass
    return jnp.where(score == 0.0, -1e20, score)


if __name__ == "__main__":
    # Small shapes: batch=8, input_dim=16 (uti/ass each 8 features),
    # res_width=32, res_depth=2, num_blocks=2.
    B = 8
    HALF = 8
    INPUT_DIM = 2 * HALF
    WIDTH = 32
    DEPTH = 2
    BLOCKS = 2

    key = jax.random.PRNGKey(0)
    k_uti, k_ass, k_par = jax.random.split(key, 3)

    uti = jax.random.normal(k_uti, (B, HALF), jnp.float32)
    # assortment indicator (0/1) — zeros exercise the score==0 -> -1e20 path
    ass = (jax.random.uniform(k_ass, (B, HALF)) > 0.5).astype(jnp.float32)

    # Deterministic synthetic parameters in PyTorch layout: W (out, in), b (out,)
    weights, biases = [], []
    pk = k_par
    for _b in range(BLOCKS):
        for _d in range(DEPTH):
            pk, kw1, kb1, kw2, kb2 = jax.random.split(pk, 5)
            weights.append(0.1 * jax.random.normal(kw1, (WIDTH, INPUT_DIM), jnp.float32))
            biases.append(0.1 * jax.random.normal(kb1, (WIDTH,), jnp.float32))
            weights.append(0.1 * jax.random.normal(kw2, (INPUT_DIM, WIDTH), jnp.float32))
            biases.append(0.1 * jax.random.normal(kb2, (INPUT_DIM,), jnp.float32))
    pk, kwf, kbf = jax.random.split(pk, 3)
    weights.append(0.1 * jax.random.normal(kwf, (HALF, INPUT_DIM), jnp.float32))
    biases.append(0.1 * jax.random.normal(kbf, (HALF,), jnp.float32))

    # Pack parameters ONCE (host-side numpy), reuse across forward calls.
    params = pack_res_assort_params(weights, biases,
                                    num_blocks=BLOCKS, res_depth=DEPTH)

    score = res_assort_net_forward(uti, ass, params)
    score = jax.block_until_ready(score)
    assert score.shape == (B, HALF)

    # Sanity check vs a pure-JAX f32 reference (bf16 matmuls inside the kernel
    # -> loose tolerance; compare only entries unmasked in both).
    ref = res_assort_net_reference(uti, ass, weights, biases,
                                   num_blocks=BLOCKS, res_depth=DEPTH)
    # Masked (ass == 0) entries must be exactly -1e20.
    assert bool(jnp.all(jnp.where(ass == 0.0, score == jnp.float32(-1e20), True)))
    both_live = (score > -1e19) & (ref > -1e19)
    err = jnp.max(jnp.abs(jnp.where(both_live, score - ref, 0.0)))
    assert bool(err < 0.1), f"max unmasked error too large: {err}"

    print("KERNEL_OK")
</pallas_src>

<mosaic_0001>
module attributes {stable_mosaic.version = 11 : i64} {
  func.func @kernel(%arg0: i32, %arg1: memref<128x8xf32, #tpu.memory_space<vmem>>, %arg2: memref<128x8xf32, #tpu.memory_space<vmem>>, %arg3: memref<4x32x16xbf16, #tpu.memory_space<vmem>>, %arg4: memref<4x16x32xbf16, #tpu.memory_space<vmem>>, %arg5: memref<32x4xf32, #tpu.memory_space<vmem>>, %arg6: memref<16x4xf32, #tpu.memory_space<vmem>>, %arg7: memref<8x16xbf16, #tpu.memory_space<vmem>>, %arg8: memref<8x1xf32, #tpu.memory_space<vmem>>, %arg9: memref<8x128xf32, #tpu.memory_space<vmem>>) attributes {dimension_semantics = [#tpu.dimension_semantics<parallel>], iteration_bounds = array<i64: 1>, scalar_prefetch = 0 : i64, scratch_operands = 0 : i64, tpu.core_type = #tpu.core_type<tc>, window_params = [{transform_indices = @transform_0, window_bounds = array<i64: 128, 8>}, {transform_indices = @transform_1, window_bounds = array<i64: 128, 8>}, {pipeline_mode = #tpu.pipeline_mode<synchronous>, transform_indices = @transform_2, window_bounds = array<i64: 4, 32, 16>}, {pipeline_mode = #tpu.pipeline_mode<synchronous>, transform_indices = @transform_3, window_bounds = array<i64: 4, 16, 32>}, {pipeline_mode = #tpu.pipeline_mode<synchronous>, transform_indices = @transform_4, window_bounds = array<i64: 32, 4>}, {pipeline_mode = #tpu.pipeline_mode<synchronous>, transform_indices = @transform_5, window_bounds = array<i64: 16, 4>}, {pipeline_mode = #tpu.pipeline_mode<synchronous>, transform_indices = @transform_6, window_bounds = array<i64: 8, 16>}, {pipeline_mode = #tpu.pipeline_mode<synchronous>, transform_indices = @transform_7, window_bounds = array<i64: 8, 1>}, {transform_indices = @transform_8, window_bounds = array<i64: 8, 128>}]} {
    %c0 = arith.constant 0 : index
    %c0_0 = arith.constant 0 : index
    %0 = vector.load %arg1[%c0, %c0_0] : memref<128x8xf32, #tpu.memory_space<vmem>>, vector<128x8xf32>
    %1 = tpu.transpose %0, [1, 0] : vector<128x8xf32> -> vector<8x128xf32>
    %c0_1 = arith.constant 0 : index
    %c0_2 = arith.constant 0 : index
    %2 = vector.load %arg2[%c0_1, %c0_2] : memref<128x8xf32, #tpu.memory_space<vmem>>, vector<128x8xf32>
    %3 = tpu.transpose %2, [1, 0] : vector<128x8xf32> -> vector<8x128xf32>
    %4 = tpu.concatenate %1, %3 in 0 : vector<8x128xf32>, vector<8x128xf32> -> vector<16x128xf32>
    %c0_3 = arith.constant 0 : index
    %c0_4 = arith.constant 0 : index
    %c0_5 = arith.constant 0 : index
    %5 = vector.load %arg3[%c0_3, %c0_4, %c0_5] : memref<4x32x16xbf16, #tpu.memory_space<vmem>>, vector<1x32x16xbf16>
    %6 = vector.shape_cast %5 : vector<1x32x16xbf16> to vector<32x16xbf16>
    %c0_6 = arith.constant 0 : index
    %c0_7 = arith.constant 0 : index
    %7 = vector.load %arg5[%c0_6, %c0_7] : memref<32x4xf32, #tpu.memory_space<vmem>>, vector<32x1xf32>
    %c0_8 = arith.constant 0 : index
    %c0_9 = arith.constant 0 : index
    %c0_10 = arith.constant 0 : index
    %8 = vector.load %arg4[%c0_8, %c0_9, %c0_10] : memref<4x16x32xbf16, #tpu.memory_space<vmem>>, vector<1x16x32xbf16>
    %9 = vector.shape_cast %8 : vector<1x16x32xbf16> to vector<16x32xbf16>
    %c0_11 = arith.constant 0 : index
    %c0_12 = arith.constant 0 : index
    %10 = vector.load %arg6[%c0_11, %c0_12] : memref<16x4xf32, #tpu.memory_space<vmem>>, vector<16x1xf32>
    %11 = arith.truncf %4 : vector<16x128xf32> to vector<16x128xbf16>
    %cst = arith.constant dense<0.000000e+00> : vector<32x128xf32>
    %12 = tpu.matmul %6, %11, %cst {dimension_numbers = #tpu.dot_dimension_numbers<[1], [0], [0], [1], [0, 0, 1, 1], [], []>} : vector<32x16xbf16>, vector<16x128xbf16>, vector<32x128xf32> -> vector<32x128xf32>
    %13 = vector.broadcast %7 : vector<32x1xf32> to vector<32x128xf32>
    %14 = arith.addf %12, %13 : vector<32x128xf32>
    %cst_13 = arith.constant 0.000000e+00 : f32
    %15 = vector.broadcast %cst_13 : f32 to vector<32x128xf32>
    %16 = arith.maximumf %14, %15 : vector<32x128xf32>
    %17 = arith.truncf %16 : vector<32x128xf32> to vector<32x128xbf16>
    %cst_14 = arith.constant dense<0.000000e+00> : vector<16x128xf32>
    %18 = tpu.matmul %9, %17, %cst_14 {dimension_numbers = #tpu.dot_dimension_numbers<[1], [0], [0], [1], [0, 0, 1, 1], [], []>} : vector<16x32xbf16>, vector<32x128xbf16>, vector<16x128xf32> -> vector<16x128xf32>
    %19 = vector.broadcast %10 : vector<16x1xf32> to vector<16x128xf32>
    %20 = arith.addf %18, %19 : vector<16x128xf32>
    %c1 = arith.constant 1 : index
    %c0_15 = arith.constant 0 : index
    %c0_16 = arith.constant 0 : index
    %21 = vector.load %arg3[%c1, %c0_15, %c0_16] : memref<4x32x16xbf16, #tpu.memory_space<vmem>>, vector<1x32x16xbf16>
    %22 = vector.shape_cast %21 : vector<1x32x16xbf16> to vector<32x16xbf16>
    %c0_17 = arith.constant 0 : index
    %c1_18 = arith.constant 1 : index
    %23 = vector.load %arg5[%c0_17, %c1_18] : memref<32x4xf32, #tpu.memory_space<vmem>>, vector<32x1xf32>
    %c1_19 = arith.constant 1 : index
    %c0_20 = arith.constant 0 : index
    %c0_21 = arith.constant 0 : index
    %24 = vector.load %arg4[%c1_19, %c0_20, %c0_21] : memref<4x16x32xbf16, #tpu.memory_space<vmem>>, vector<1x16x32xbf16>
    %25 = vector.shape_cast %24 : vector<1x16x32xbf16> to vector<16x32xbf16>
    %c0_22 = arith.constant 0 : index
    %c1_23 = arith.constant 1 : index
    %26 = vector.load %arg6[%c0_22, %c1_23] : memref<16x4xf32, #tpu.memory_space<vmem>>, vector<16x1xf32>
    %27 = arith.truncf %20 : vector<16x128xf32> to vector<16x128xbf16>
    %cst_24 = arith.constant dense<0.000000e+00> : vector<32x128xf32>
    %28 = tpu.matmul %22, %27, %cst_24 {dimension_numbers = #tpu.dot_dimension_numbers<[1], [0], [0], [1], [0, 0, 1, 1], [], []>} : vector<32x16xbf16>, vector<16x128xbf16>, vector<32x128xf32> -> vector<32x128xf32>
    %29 = vector.broadcast %23 : vector<32x1xf32> to vector<32x128xf32>
    %30 = arith.addf %28, %29 : vector<32x128xf32>
    %cst_25 = arith.constant 0.000000e+00 : f32
    %31 = vector.broadcast %cst_25 : f32 to vector<32x128xf32>
    %32 = arith.maximumf %30, %31 : vector<32x128xf32>
    %33 = arith.truncf %32 : vector<32x128xf32> to vector<32x128xbf16>
    %cst_26 = arith.constant dense<0.000000e+00> : vector<16x128xf32>
    %34 = tpu.matmul %25, %33, %cst_26 {dimension_numbers = #tpu.dot_dimension_numbers<[1], [0], [0], [1], [0, 0, 1, 1], [], []>} : vector<16x32xbf16>, vector<32x128xbf16>, vector<16x128xf32> -> vector<16x128xf32>
    %35 = vector.broadcast %26 : vector<16x1xf32> to vector<16x128xf32>
    %36 = arith.addf %34, %35 : vector<16x128xf32>
    %37 = arith.addf %4, %36 : vector<16x128xf32>
    %c2 = arith.constant 2 : index
    %c0_27 = arith.constant 0 : index
    %c0_28 = arith.constant 0 : index
    %38 = vector.load %arg3[%c2, %c0_27, %c0_28] : memref<4x32x16xbf16, #tpu.memory_space<vmem>>, vector<1x32x16xbf16>
    %39 = vector.shape_cast %38 : vector<1x32x16xbf16> to vector<32x16xbf16>
    %c0_29 = arith.constant 0 : index
    %c2_30 = arith.constant 2 : index
    %40 = vector.load %arg5[%c0_29, %c2_30] : memref<32x4xf32, #tpu.memory_space<vmem>>, vector<32x1xf32>
    %c2_31 = arith.constant 2 : index
    %c0_32 = arith.constant 0 : index
    %c0_33 = arith.constant 0 : index
    %41 = vector.load %arg4[%c2_31, %c0_32, %c0_33] : memref<4x16x32xbf16, #tpu.memory_space<vmem>>, vector<1x16x32xbf16>
    %42 = vector.shape_cast %41 : vector<1x16x32xbf16> to vector<16x32xbf16>
    %c0_34 = arith.constant 0 : index
    %c2_35 = arith.constant 2 : index
    %43 = vector.load %arg6[%c0_34, %c2_35] : memref<16x4xf32, #tpu.memory_space<vmem>>, vector<16x1xf32>
    %44 = arith.truncf %37 : vector<16x128xf32> to vector<16x128xbf16>
    %cst_36 = arith.constant dense<0.000000e+00> : vector<32x128xf32>
    %45 = tpu.matmul %39, %44, %cst_36 {dimension_numbers = #tpu.dot_dimension_numbers<[1], [0], [0], [1], [0, 0, 1, 1], [], []>} : vector<32x16xbf16>, vector<16x128xbf16>, vector<32x128xf32> -> vector<32x128xf32>
    %46 = vector.broadcast %40 : vector<32x1xf32> to vector<32x128xf32>
    %47 = arith.addf %45, %46 : vector<32x128xf32>
    %cst_37 = arith.constant 0.000000e+00 : f32
    %48 = vector.broadcast %cst_37 : f32 to vector<32x128xf32>
    %49 = arith.maximumf %47, %48 : vector<32x128xf32>
    %50 = arith.truncf %49 : vector<32x128xf32> to vector<32x128xbf16>
    %cst_38 = arith.constant dense<0.000000e+00> : vector<16x128xf32>
    %51 = tpu.matmul %42, %50, %cst_38 {dimension_numbers = #tpu.dot_dimension_numbers<[1], [0], [0], [1], [0, 0, 1, 1], [], []>} : vector<16x32xbf16>, vector<32x128xbf16>, vector<16x128xf32> -> vector<16x128xf32>
    %52 = vector.broadcast %43 : vector<16x1xf32> to vector<16x128xf32>
    %53 = arith.addf %51, %52 : vector<16x128xf32>
    %c3 = arith.constant 3 : index
    %c0_39 = arith.constant 0 : index
    %c0_40 = arith.constant 0 : index
    %54 = vector.load %arg3[%c3, %c0_39, %c0_40] : memref<4x32x16xbf16, #tpu.memory_space<vmem>>, vector<1x32x16xbf16>
    %55 = vector.shape_cast %54 : vector<1x32x16xbf16> to vector<32x16xbf16>
    %c0_41 = arith.constant 0 : index
    %c3_42 = arith.constant 3 : index
    %56 = vector.load %arg5[%c0_41, %c3_42] : memref<32x4xf32, #tpu.memory_space<vmem>>, vector<32x1xf32>
    %c3_43 = arith.constant 3 : index
    %c0_44 = arith.constant 0 : index
    %c0_45 = arith.constant 0 : index
    %57 = vector.load %arg4[%c3_43, %c0_44, %c0_45] : memref<4x16x32xbf16, #tpu.memory_space<vmem>>, vector<1x16x32xbf16>
    %58 = vector.shape_cast %57 : vector<1x16x32xbf16> to vector<16x32xbf16>
    %c0_46 = arith.constant 0 : index
    %c3_47 = arith.constant 3 : index
    %59 = vector.load %arg6[%c0_46, %c3_47] : memref<16x4xf32, #tpu.memory_space<vmem>>, vector<16x1xf32>
    %60 = arith.truncf %53 : vector<16x128xf32> to vector<16x128xbf16>
    %cst_48 = arith.constant dense<0.000000e+00> : vector<32x128xf32>
    %61 = tpu.matmul %55, %60, %cst_48 {dimension_numbers = #tpu.dot_dimension_numbers<[1], [0], [0], [1], [0, 0, 1, 1], [], []>} : vector<32x16xbf16>, vector<16x128xbf16>, vector<32x128xf32> -> vector<32x128xf32>
    %62 = vector.broadcast %56 : vector<32x1xf32> to vector<32x128xf32>
    %63 = arith.addf %61, %62 : vector<32x128xf32>
    %cst_49 = arith.constant 0.000000e+00 : f32
    %64 = vector.broadcast %cst_49 : f32 to vector<32x128xf32>
    %65 = arith.maximumf %63, %64 : vector<32x128xf32>
    %66 = arith.truncf %65 : vector<32x128xf32> to vector<32x128xbf16>
    %cst_50 = arith.constant dense<0.000000e+00> : vector<16x128xf32>
    %67 = tpu.matmul %58, %66, %cst_50 {dimension_numbers = #tpu.dot_dimension_numbers<[1], [0], [0], [1], [0, 0, 1, 1], [], []>} : vector<16x32xbf16>, vector<32x128xbf16>, vector<16x128xf32> -> vector<16x128xf32>
    %68 = vector.broadcast %59 : vector<16x1xf32> to vector<16x128xf32>
    %69 = arith.addf %67, %68 : vector<16x128xf32>
    %70 = arith.addf %37, %69 : vector<16x128xf32>
    %c0_51 = arith.constant 0 : index
    %c0_52 = arith.constant 0 : index
    %71 = vector.load %arg7[%c0_51, %c0_52] : memref<8x16xbf16, #tpu.memory_space<vmem>>, vector<8x16xbf16>
    %72 = arith.truncf %70 : vector<16x128xf32> to vector<16x128xbf16>
    %cst_53 = arith.constant dense<0.000000e+00> : vector<8x128xf32>
    %73 = tpu.matmul %71, %72, %cst_53 {dimension_numbers = #tpu.dot_dimension_numbers<[1], [0], [0], [1], [0, 0, 1, 1], [], []>} : vector<8x16xbf16>, vector<16x128xbf16>, vector<8x128xf32> -> vector<8x128xf32>
    %c0_54 = arith.constant 0 : index
    %c0_55 = arith.constant 0 : index
    %74 = vector.load %arg8[%c0_54, %c0_55] : memref<8x1xf32, #tpu.memory_space<vmem>>, vector<8x1xf32>
    %75 = vector.broadcast %74 : vector<8x1xf32> to vector<8x128xf32>
    %76 = arith.addf %73, %75 : vector<8x128xf32>
    %77 = arith.mulf %76, %3 : vector<8x128xf32>
    %cst_56 = arith.constant 0.000000e+00 : f32
    %78 = vector.broadcast %cst_56 : f32 to vector<8x128xf32>
    %79 = arith.cmpf oeq, %77, %78 : vector<8x128xf32>
    %cst_57 = arith.constant -1.000000e+20 : f32
    %80 = vector.broadcast %cst_57 : f32 to vector<8x128xf32>
    %81 = arith.select %79, %80, %77 : vector<8x128xi1>, vector<8x128xf32>
    %c0_58 = arith.constant 0 : index
    %c0_59 = arith.constant 0 : index
    %82 = vector.load %arg9[%c0_58, %c0_59] : memref<8x128xf32, #tpu.memory_space<vmem>>, vector<8x128xf32>
    tpu.vector_store %arg9[%c0_58, %c0_59], %81 {strides = array<i32>} : memref<8x128xf32, #tpu.memory_space<vmem>>, vector<8x128xf32>,
    return
  }
  func.func @transform_0(%arg0: i32) -> (i32, i32) {
    %c0_i32 = arith.constant 0 : i32
    %c0_i32_0 = arith.constant 0 : i32
    return %arg0, %c0_i32 : i32, i32
  }
  func.func @transform_1(%arg0: i32) -> (i32, i32) {
    %c0_i32 = arith.constant 0 : i32
    %c0_i32_0 = arith.constant 0 : i32
    return %arg0, %c0_i32 : i32, i32
  }
  func.func @transform_2(%arg0: i32) -> (i32, i32, i32) {
    %c0_i32 = arith.constant 0 : i32
    %c0_i32_0 = arith.constant 0 : i32
    %c0_i32_1 = arith.constant 0 : i32
    %c0_i32_2 = arith.constant 0 : i32
    return %c0_i32, %c0_i32_0, %c0_i32_1 : i32, i32, i32
  }
  func.func @transform_3(%arg0: i32) -> (i32, i32, i32) {
    %c0_i32 = arith.constant 0 : i32
    %c0_i32_0 = arith.constant 0 : i32
    %c0_i32_1 = arith.constant 0 : i32
    %c0_i32_2 = arith.constant 0 : i32
    return %c0_i32, %c0_i32_0, %c0_i32_1 : i32, i32, i32
  }
  func.func @transform_4(%arg0: i32) -> (i32, i32) {
    %c0_i32 = arith.constant 0 : i32
    %c0_i32_0 = arith.constant 0 : i32
    %c0_i32_1 = arith.constant 0 : i32
    return %c0_i32, %c0_i32_0 : i32, i32
  }
  func.func @transform_5(%arg0: i32) -> (i32, i32) {
    %c0_i32 = arith.constant 0 : i32
    %c0_i32_0 = arith.constant 0 : i32
    %c0_i32_1 = arith.constant 0 : i32
    return %c0_i32, %c0_i32_0 : i32, i32
  }
  func.func @transform_6(%arg0: i32) -> (i32, i32) {
    %c0_i32 = arith.constant 0 : i32
    %c0_i32_0 = arith.constant 0 : i32
    %c0_i32_1 = arith.constant 0 : i32
    return %c0_i32, %c0_i32_0 : i32, i32
  }
  func.func @transform_7(%arg0: i32) -> (i32, i32) {
    %c0_i32 = arith.constant 0 : i32
    %c0_i32_0 = arith.constant 0 : i32
    %c0_i32_1 = arith.constant 0 : i32
    return %c0_i32, %c0_i32_0 : i32, i32
  }
  func.func @transform_8(%arg0: i32) -> (i32, i32) {
    %c0_i32 = arith.constant 0 : i32
    %c0_i32_0 = arith.constant 0 : i32
    return %c0_i32, %arg0 : i32, i32
  }
}

module attributes {stable_mosaic.version = 11 : i64} {
  func.func @kernel(%arg0: i32, %arg1: memref<128x8xf32, #tpu.memory_space<vmem>>, %arg2: memref<128x8xf32, #tpu.memory_space<vmem>>, %arg3: memref<4x32x16xbf16, #tpu.memory_space<vmem>>, %arg4: memref<4x16x32xbf16, #tpu.memory_space<vmem>>, %arg5: memref<32x4xf32, #tpu.memory_space<vmem>>, %arg6: memref<16x4xf32, #tpu.memory_space<vmem>>, %arg7: memref<8x16xbf16, #tpu.memory_space<vmem>>, %arg8: memref<8x1xf32, #tpu.memory_space<vmem>>, %arg9: memref<8x128xf32, #tpu.memory_space<vmem>>) attributes {dimension_semantics = [#tpu.dimension_semantics<parallel>], iteration_bounds = array<i64: 1>, scalar_prefetch = 0 : i64, scratch_operands = 0 : i64, tpu.core_type = #tpu.core_type<tc>, window_params = [{transform_indices = @transform_0, window_bounds = array<i64: 128, 8>}, {transform_indices = @transform_1, window_bounds = array<i64: 128, 8>}, {pipeline_mode = #tpu.pipeline_mode<synchronous>, transform_indices = @transform_2, window_bounds = array<i64: 4, 32, 16>}, {pipeline_mode = #tpu.pipeline_mode<synchronous>, transform_indices = @transform_3, window_bounds = array<i64: 4, 16, 32>}, {pipeline_mode = #tpu.pipeline_mode<synchronous>, transform_indices = @transform_4, window_bounds = array<i64: 32, 4>}, {pipeline_mode = #tpu.pipeline_mode<synchronous>, transform_indices = @transform_5, window_bounds = array<i64: 16, 4>}, {pipeline_mode = #tpu.pipeline_mode<synchronous>, transform_indices = @transform_6, window_bounds = array<i64: 8, 16>}, {pipeline_mode = #tpu.pipeline_mode<synchronous>, transform_indices = @transform_7, window_bounds = array<i64: 8, 1>}, {transform_indices = @transform_8, window_bounds = array<i64: 8, 128>}]} {
    %c0 = arith.constant 0 : index
    %c0_0 = arith.constant 0 : index
    %0 = vector.load %arg1[%c0, %c0_0] : memref<128x8xf32, #tpu.memory_space<vmem>>, vector<128x8xf32>
    %1 = tpu.transpose %0, [1, 0] : vector<128x8xf32> -> vector<8x128xf32>
    %c0_1 = arith.constant 0 : index
    %c0_2 = arith.constant 0 : index
    %2 = vector.load %arg2[%c0_1, %c0_2] : memref<128x8xf32, #tpu.memory_space<vmem>>, vector<128x8xf32>
    %3 = tpu.transpose %2, [1, 0] : vector<128x8xf32> -> vector<8x128xf32>
    %4 = tpu.concatenate %1, %3 in 0 : vector<8x128xf32>, vector<8x128xf32> -> vector<16x128xf32>
    %c0_3 = arith.constant 0 : index
    %c0_4 = arith.constant 0 : index
    %c0_5 = arith.constant 0 : index
    %5 = vector.load %arg3[%c0_3, %c0_4, %c0_5] : memref<4x32x16xbf16, #tpu.memory_space<vmem>>, vector<1x32x16xbf16>
    %6 = vector.shape_cast %5 : vector<1x32x16xbf16> to vector<32x16xbf16>
    %c0_6 = arith.constant 0 : index
    %c0_7 = arith.constant 0 : index
    %7 = vector.load %arg5[%c0_6, %c0_7] : memref<32x4xf32, #tpu.memory_space<vmem>>, vector<32x1xf32>
    %c0_8 = arith.constant 0 : index
    %c0_9 = arith.constant 0 : index
    %c0_10 = arith.constant 0 : index
    %8 = vector.load %arg4[%c0_8, %c0_9, %c0_10] : memref<4x16x32xbf16, #tpu.memory_space<vmem>>, vector<1x16x32xbf16>
    %9 = vector.shape_cast %8 : vector<1x16x32xbf16> to vector<16x32xbf16>
    %c0_11 = arith.constant 0 : index
    %c0_12 = arith.constant 0 : index
    %10 = vector.load %arg6[%c0_11, %c0_12] : memref<16x4xf32, #tpu.memory_space<vmem>>, vector<16x1xf32>
    %11 = arith.truncf %4 : vector<16x128xf32> to vector<16x128xbf16>
    %cst = arith.constant dense<0.000000e+00> : vector<32x128xf32>
    %12 = tpu.matmul %6, %11, %cst {dimension_numbers = #tpu.dot_dimension_numbers<[1], [0], [0], [1], [0, 0, 1, 1], [], []>} : vector<32x16xbf16>, vector<16x128xbf16>, vector<32x128xf32> -> vector<32x128xf32>
    %13 = vector.broadcast %7 : vector<32x1xf32> to vector<32x128xf32>
    %14 = arith.addf %12, %13 : vector<32x128xf32>
    %cst_13 = arith.constant 0.000000e+00 : f32
    %15 = vector.broadcast %cst_13 : f32 to vector<32x128xf32>
    %16 = arith.maximumf %14, %15 : vector<32x128xf32>
    %17 = arith.truncf %16 : vector<32x128xf32> to vector<32x128xbf16>
    %cst_14 = arith.constant dense<0.000000e+00> : vector<16x128xf32>
    %18 = tpu.matmul %9, %17, %cst_14 {dimension_numbers = #tpu.dot_dimension_numbers<[1], [0], [0], [1], [0, 0, 1, 1], [], []>} : vector<16x32xbf16>, vector<32x128xbf16>, vector<16x128xf32> -> vector<16x128xf32>
    %19 = vector.broadcast %10 : vector<16x1xf32> to vector<16x128xf32>
    %20 = arith.addf %18, %19 : vector<16x128xf32>
    %c1 = arith.constant 1 : index
    %c0_15 = arith.constant 0 : index
    %c0_16 = arith.constant 0 : index
    %21 = vector.load %arg3[%c1, %c0_15, %c0_16] : memref<4x32x16xbf16, #tpu.memory_space<vmem>>, vector<1x32x16xbf16>
    %22 = vector.shape_cast %21 : vector<1x32x16xbf16> to vector<32x16xbf16>
    %c0_17 = arith.constant 0 : index
    %c1_18 = arith.constant 1 : index
    %23 = vector.load %arg5[%c0_17, %c1_18] : memref<32x4xf32, #tpu.memory_space<vmem>>, vector<32x1xf32>
    %c1_19 = arith.constant 1 : index
    %c0_20 = arith.constant 0 : index
    %c0_21 = arith.constant 0 : index
    %24 = vector.load %arg4[%c1_19, %c0_20, %c0_21] : memref<4x16x32xbf16, #tpu.memory_space<vmem>>, vector<1x16x32xbf16>
    %25 = vector.shape_cast %24 : vector<1x16x32xbf16> to vector<16x32xbf16>
    %c0_22 = arith.constant 0 : index
    %c1_23 = arith.constant 1 : index
    %26 = vector.load %arg6[%c0_22, %c1_23] : memref<16x4xf32, #tpu.memory_space<vmem>>, vector<16x1xf32>
    %27 = arith.truncf %20 : vector<16x128xf32> to vector<16x128xbf16>
    %cst_24 = arith.constant dense<0.000000e+00> : vector<32x128xf32>
    %28 = tpu.matmul %22, %27, %cst_24 {dimension_numbers = #tpu.dot_dimension_numbers<[1], [0], [0], [1], [0, 0, 1, 1], [], []>} : vector<32x16xbf16>, vector<16x128xbf16>, vector<32x128xf32> -> vector<32x128xf32>
    %29 = vector.broadcast %23 : vector<32x1xf32> to vector<32x128xf32>
    %30 = arith.addf %28, %29 : vector<32x128xf32>
    %cst_25 = arith.constant 0.000000e+00 : f32
    %31 = vector.broadcast %cst_25 : f32 to vector<32x128xf32>
    %32 = arith.maximumf %30, %31 : vector<32x128xf32>
    %33 = arith.truncf %32 : vector<32x128xf32> to vector<32x128xbf16>
    %cst_26 = arith.constant dense<0.000000e+00> : vector<16x128xf32>
    %34 = tpu.matmul %25, %33, %cst_26 {dimension_numbers = #tpu.dot_dimension_numbers<[1], [0], [0], [1], [0, 0, 1, 1], [], []>} : vector<16x32xbf16>, vector<32x128xbf16>, vector<16x128xf32> -> vector<16x128xf32>
    %35 = vector.broadcast %26 : vector<16x1xf32> to vector<16x128xf32>
    %36 = arith.addf %34, %35 : vector<16x128xf32>
    %37 = arith.addf %4, %36 : vector<16x128xf32>
    %c2 = arith.constant 2 : index
    %c0_27 = arith.constant 0 : index
    %c0_28 = arith.constant 0 : index
    %38 = vector.load %arg3[%c2, %c0_27, %c0_28] : memref<4x32x16xbf16, #tpu.memory_space<vmem>>, vector<1x32x16xbf16>
    %39 = vector.shape_cast %38 : vector<1x32x16xbf16> to vector<32x16xbf16>
    %c0_29 = arith.constant 0 : index
    %c2_30 = arith.constant 2 : index
    %40 = vector.load %arg5[%c0_29, %c2_30] : memref<32x4xf32, #tpu.memory_space<vmem>>, vector<32x1xf32>
    %c2_31 = arith.constant 2 : index
    %c0_32 = arith.constant 0 : index
    %c0_33 = arith.constant 0 : index
    %41 = vector.load %arg4[%c2_31, %c0_32, %c0_33] : memref<4x16x32xbf16, #tpu.memory_space<vmem>>, vector<1x16x32xbf16>
    %42 = vector.shape_cast %41 : vector<1x16x32xbf16> to vector<16x32xbf16>
    %c0_34 = arith.constant 0 : index
    %c2_35 = arith.constant 2 : index
    %43 = vector.load %arg6[%c0_34, %c2_35] : memref<16x4xf32, #tpu.memory_space<vmem>>, vector<16x1xf32>
    %44 = arith.truncf %37 : vector<16x128xf32> to vector<16x128xbf16>
    %cst_36 = arith.constant dense<0.000000e+00> : vector<32x128xf32>
    %45 = tpu.matmul %39, %44, %cst_36 {dimension_numbers = #tpu.dot_dimension_numbers<[1], [0], [0], [1], [0, 0, 1, 1], [], []>} : vector<32x16xbf16>, vector<16x128xbf16>, vector<32x128xf32> -> vector<32x128xf32>
    %46 = vector.broadcast %40 : vector<32x1xf32> to vector<32x128xf32>
    %47 = arith.addf %45, %46 : vector<32x128xf32>
    %cst_37 = arith.constant 0.000000e+00 : f32
    %48 = vector.broadcast %cst_37 : f32 to vector<32x128xf32>
    %49 = arith.maximumf %47, %48 : vector<32x128xf32>
    %50 = arith.truncf %49 : vector<32x128xf32> to vector<32x128xbf16>
    %cst_38 = arith.constant dense<0.000000e+00> : vector<16x128xf32>
    %51 = tpu.matmul %42, %50, %cst_38 {dimension_numbers = #tpu.dot_dimension_numbers<[1], [0], [0], [1], [0, 0, 1, 1], [], []>} : vector<16x32xbf16>, vector<32x128xbf16>, vector<16x128xf32> -> vector<16x128xf32>
    %52 = vector.broadcast %43 : vector<16x1xf32> to vector<16x128xf32>
    %53 = arith.addf %51, %52 : vector<16x128xf32>
    %c3 = arith.constant 3 : index
    %c0_39 = arith.constant 0 : index
    %c0_40 = arith.constant 0 : index
    %54 = vector.load %arg3[%c3, %c0_39, %c0_40] : memref<4x32x16xbf16, #tpu.memory_space<vmem>>, vector<1x32x16xbf16>
    %55 = vector.shape_cast %54 : vector<1x32x16xbf16> to vector<32x16xbf16>
    %c0_41 = arith.constant 0 : index
    %c3_42 = arith.constant 3 : index
    %56 = vector.load %arg5[%c0_41, %c3_42] : memref<32x4xf32, #tpu.memory_space<vmem>>, vector<32x1xf32>
    %c3_43 = arith.constant 3 : index
    %c0_44 = arith.constant 0 : index
    %c0_45 = arith.constant 0 : index
    %57 = vector.load %arg4[%c3_43, %c0_44, %c0_45] : memref<4x16x32xbf16, #tpu.memory_space<vmem>>, vector<1x16x32xbf16>
    %58 = vector.shape_cast %57 : vector<1x16x32xbf16> to vector<16x32xbf16>
    %c0_46 = arith.constant 0 : index
    %c3_47 = arith.constant 3 : index
    %59 = vector.load %arg6[%c0_46, %c3_47] : memref<16x4xf32, #tpu.memory_space<vmem>>, vector<16x1xf32>
    %60 = arith.truncf %53 : vector<16x128xf32> to vector<16x128xbf16>
    %cst_48 = arith.constant dense<0.000000e+00> : vector<32x128xf32>
    %61 = tpu.matmul %55, %60, %cst_48 {dimension_numbers = #tpu.dot_dimension_numbers<[1], [0], [0], [1], [0, 0, 1, 1], [], []>} : vector<32x16xbf16>, vector<16x128xbf16>, vector<32x128xf32> -> vector<32x128xf32>
    %62 = vector.broadcast %56 : vector<32x1xf32> to vector<32x128xf32>
    %63 = arith.addf %61, %62 : vector<32x128xf32>
    %cst_49 = arith.constant 0.000000e+00 : f32
    %64 = vector.broadcast %cst_49 : f32 to vector<32x128xf32>
    %65 = arith.maximumf %63, %64 : vector<32x128xf32>
    %66 = arith.truncf %65 : vector<32x128xf32> to vector<32x128xbf16>
    %cst_50 = arith.constant dense<0.000000e+00> : vector<16x128xf32>
    %67 = tpu.matmul %58, %66, %cst_50 {dimension_numbers = #tpu.dot_dimension_numbers<[1], [0], [0], [1], [0, 0, 1, 1], [], []>} : vector<16x32xbf16>, vector<32x128xbf16>, vector<16x128xf32> -> vector<16x128xf32>
    %68 = vector.broadcast %59 : vector<16x1xf32> to vector<16x128xf32>
    %69 = arith.addf %67, %68 : vector<16x128xf32>
    %70 = arith.addf %37, %69 : vector<16x128xf32>
    %c0_51 = arith.constant 0 : index
    %c0_52 = arith.constant 0 : index
    %71 = vector.load %arg7[%c0_51, %c0_52] : memref<8x16xbf16, #tpu.memory_space<vmem>>, vector<8x16xbf16>
    %72 = arith.truncf %70 : vector<16x128xf32> to vector<16x128xbf16>
    %cst_53 = arith.constant dense<0.000000e+00> : vector<8x128xf32>
    %73 = tpu.matmul %71, %72, %cst_53 {dimension_numbers = #tpu.dot_dimension_numbers<[1], [0], [0], [1], [0, 0, 1, 1], [], []>} : vector<8x16xbf16>, vector<16x128xbf16>, vector<8x128xf32> -> vector<8x128xf32>
    %c0_54 = arith.constant 0 : index
    %c0_55 = arith.constant 0 : index
    %74 = vector.load %arg8[%c0_54, %c0_55] : memref<8x1xf32, #tpu.memory_space<vmem>>, vector<8x1xf32>
    %75 = vector.broadcast %74 : vector<8x1xf32> to vector<8x128xf32>
    %76 = arith.addf %73, %75 : vector<8x128xf32>
    %77 = arith.mulf %76, %3 : vector<8x128xf32>
    %cst_56 = arith.constant 0.000000e+00 : f32
    %78 = vector.broadcast %cst_56 : f32 to vector<8x128xf32>
    %79 = arith.cmpf oeq, %77, %78 : vector<8x128xf32>
    %cst_57 = arith.constant -1.000000e+20 : f32
    %80 = vector.broadcast %cst_57 : f32 to vector<8x128xf32>
    %81 = arith.select %79, %80, %77 : vector<8x128xi1>, vector<8x128xf32>
    %c0_58 = arith.constant 0 : index
    %c0_59 = arith.constant 0 : index
    %82 = vector.load %arg9[%c0_58, %c0_59] : memref<8x128xf32, #tpu.memory_space<vmem>>, vector<8x128xf32>
    tpu.vector_store %arg9[%c0_58, %c0_59], %81 {strides = array<i32>} : memref<8x128xf32, #tpu.memory_space<vmem>>, vector<8x128xf32>,
    return
  }
  func.func @transform_0(%arg0: i32) -> (i32, i32) {
    %c0_i32 = arith.constant 0 : i32
    %c0_i32_0 = arith.constant 0 : i32
    return %arg0, %c0_i32 : i32, i32
  }
  func.func @transform_1(%arg0: i32) -> (i32, i32) {
    %c0_i32 = arith.constant 0 : i32
    %c0_i32_0 = arith.constant 0 : i32
    return %arg0, %c0_i32 : i32, i32
  }
  func.func @transform_2(%arg0: i32) -> (i32, i32, i32) {
    %c0_i32 = arith.constant 0 : i32
    %c0_i32_0 = arith.constant 0 : i32
    %c0_i32_1 = arith.constant 0 : i32
    %c0_i32_2 = arith.constant 0 : i32
    return %c0_i32, %c0_i32_0, %c0_i32_1 : i32, i32, i32
  }
  func.func @transform_3(%arg0: i32) -> (i32, i32, i32) {
    %c0_i32 = arith.constant 0 : i32
    %c0_i32_0 = arith.constant 0 : i32
    %c0_i32_1 = arith.constant 0 : i32
    %c0_i32_2 = arith.constant 0 : i32
    return %c0_i32, %c0_i32_0, %c0_i32_1 : i32, i32, i32
  }
  func.func @transform_4(%arg0: i32) -> (i32, i32) {
    %c0_i32 = arith.constant 0 : i32
    %c0_i32_0 = arith.constant 0 : i32
    %c0_i32_1 = arith.constant 0 : i32
    return %c0_i32, %c0_i32_0 : i32, i32
  }
  func.func @transform_5(%arg0: i32) -> (i32, i32) {
    %c0_i32 = arith.constant 0 : i32
    %c0_i32_0 = arith.constant 0 : i32
    %c0_i32_1 = arith.constant 0 : i32
    return %c0_i32, %c0_i32_0 : i32, i32
  }
  func.func @transform_6(%arg0: i32) -> (i32, i32) {
    %c0_i32 = arith.constant 0 : i32
    %c0_i32_0 = arith.constant 0 : i32
    %c0_i32_1 = arith.constant 0 : i32
    return %c0_i32, %c0_i32_0 : i32, i32
  }
  func.func @transform_7(%arg0: i32) -> (i32, i32) {
    %c0_i32 = arith.constant 0 : i32
    %c0_i32_0 = arith.constant 0 : i32
    %c0_i32_1 = arith.constant 0 : i32
    return %c0_i32, %c0_i32_0 : i32, i32
  }
  func.func @transform_8(%arg0: i32) -> (i32, i32) {
    %c0_i32 = arith.constant 0 : i32
    %c0_i32_0 = arith.constant 0 : i32
    return %c0_i32, %arg0 : i32, i32
  }
}

</mosaic_0001>

<llo_original>
// kernel: tpu_custom_call.1
$region0: #{tpu_custom_call.1}
  #allocation0 [shape = 'u32[]', space=smem, size = 0x4, offset = 0x4, fixed_abs, tag = 'smem constant byte address 0x4 - core index']
  #allocation1 [shape = 'u32[144,128]{1,0:T(1,128)}', space=vmem, size = 0x12000, scoped, tag = 'internal scratch']
  %s0 = inlined_call_operand.vmem [shape: f32[128,8], index: 0, kind: input, shape index: {}]
  %s1 = inlined_call_operand.vmem [shape: f32[128,8], index: 1, kind: input, shape index: {}]
  %s2 = inlined_call_operand.vmem [shape: bf16[4,32,16], index: 2, kind: input, shape index: {}]
  %s3 = inlined_call_operand.vmem [shape: bf16[4,16,32], index: 3, kind: input, shape index: {}]
  %s4 = inlined_call_operand.vmem [shape: f32[32,4], index: 4, kind: input, shape index: {}]
  %s5 = inlined_call_operand.vmem [shape: f32[16,4], index: 5, kind: input, shape index: {}]
  %s6 = inlined_call_operand.vmem [shape: bf16[8,16], index: 6, kind: input, shape index: {}]
  %s7 = inlined_call_operand.vmem [shape: f32[8,1], index: 7, kind: input, shape index: {}]
  %s8 = inlined_call_operand.hbm [shape: f32[8,128], index: 8, kind: output, shape index: {}]
  %s9 = sld [smem:[#allocation0]]
  $region42: #{tpu_custom_call.1} parent=0
    _
  %s11 = ssub.s32 1, %s9
  %s12 = scalar_select 0, %s11, %s9
  $region1: #{tpu_custom_call.1} parent=0
    #allocation2 [shape = 'u8[4096]{0}', space=vmem, size = 0x1000, scoped, tag = 'output window, operand 0, single buffered']
    #allocation3 [shape = 's32[1]{0}', space=sflag, size = 0x4, scoped, tag = 'scoped memory for tpu_custom_call.1']
    %13 = vsyncpa [#allocation3], 0
    // Predicated region
    $region2: #{tpu_custom_call.1} parent=1 // pred_check
      _
    $region3: #{tpu_custom_call.1} parent=1 // pred_check_branch
      %15 = sbr.rel (0) target = $region5
    $region4: #{tpu_custom_call.1} parent=1 // pred_region
      _
    $region5: #{tpu_custom_call.1} parent=1 // pred_fallthru
      _
    // Predicated region
    $region6: #{tpu_custom_call.1} parent=1 // pred_check
      _
    $region7: #{tpu_custom_call.1} parent=1 // pred_check_branch
      %17 = sbr.rel (0) target = $region9
    $region8: #{tpu_custom_call.1} parent=1 // pred_region
      _
    $region9: #{tpu_custom_call.1} parent=1 // pred_fallthru
      _
    // Predicated region
    $region10: #{tpu_custom_call.1} parent=1 // pred_check
      _
    $region11: #{tpu_custom_call.1} parent=1 // pred_check_branch
      %19 = sbr.rel (0) target = $region13
    $region12: #{tpu_custom_call.1} parent=1 // pred_region
      _
    $region13: #{tpu_custom_call.1} parent=1 // pred_fallthru
      _
    // Predicated region
    $region14: #{tpu_custom_call.1} parent=1 // pred_check
      _
    $region15: #{tpu_custom_call.1} parent=1 // pred_check_branch
      %21 = sbr.rel (0) target = $region17
    $region16: #{tpu_custom_call.1} parent=1 // pred_region
      _
    $region17: #{tpu_custom_call.1} parent=1 // pred_fallthru
      _
    // Predicated region
    $region18: #{tpu_custom_call.1} parent=1 // pred_check
      _
    $region19: #{tpu_custom_call.1} parent=1 // pred_check_branch
      %23 = sbr.rel (0) target = $region21
    $region20: #{tpu_custom_call.1} parent=1 // pred_region
      _
    $region21: #{tpu_custom_call.1} parent=1 // pred_fallthru
      _
    // Predicated region
    $region22: #{tpu_custom_call.1} parent=1 // pred_check
      _
    $region23: #{tpu_custom_call.1} parent=1 // pred_check_branch
      %25 = sbr.rel (0) target = $region25
    $region24: #{tpu_custom_call.1} parent=1 // pred_region
      _
    $region25: #{tpu_custom_call.1} parent=1 // pred_fallthru
      _
    // Predicated region
    $region26: #{tpu_custom_call.1} parent=1 // pred_check
      _
    $region27: #{tpu_custom_call.1} parent=1 // pred_check_branch
      %27 = sbr.rel (0) target = $region29
    $region28: #{tpu_custom_call.1} parent=1 // pred_region
      _
    $region29: #{tpu_custom_call.1} parent=1 // pred_fallthru
      _
    // Predicated region
    $region30: #{tpu_custom_call.1} parent=1 // pred_check
      _
    $region31: #{tpu_custom_call.1} parent=1 // pred_check_branch
      %29 = sbr.rel (0) target = $region33
    $region32: #{tpu_custom_call.1} parent=1 // pred_region
      _
    $region33: #{tpu_custom_call.1} parent=1 // pred_fallthru
      _
    %v31 = vld [vmem:[%s0] sm:$0xff]
    %v32 = vld [vmem:[%s0 + $0x8] sm:$0xff]
    %v33 = vld [vmem:[%s0 + $0x10] sm:$0xff]
    %v34 = vld [vmem:[%s0 + $0x18] sm:$0xff]
    %v35 = vld [vmem:[%s0 + $0x20] sm:$0xff]
    %v36 = vld [vmem:[%s0 + $0x28] sm:$0xff]
    %v37 = vld [vmem:[%s0 + $0x30] sm:$0xff]
    %v38 = vld [vmem:[%s0 + $0x38] sm:$0xff]
    %v39 = vld [vmem:[%s0 + $0x40] sm:$0xff]
    %v40 = vld [vmem:[%s0 + $0x48] sm:$0xff]
    %v41 = vld [vmem:[%s0 + $0x50] sm:$0xff]
    %v42 = vld [vmem:[%s0 + $0x58] sm:$0xff]
    %v43 = vld [vmem:[%s0 + $0x60] sm:$0xff]
    %v44 = vld [vmem:[%s0 + $0x68] sm:$0xff]
    %v45 = vld [vmem:[%s0 + $0x70] sm:$0xff]
    %v46 = vld [vmem:[%s0 + $0x78] sm:$0xff]
    %47 = vxpose.xlu0.b32.start [1/16] %v31, 128
    %48 = vxpose.xlu0.b32.cont [2/16] %v32, 128
    %49 = vxpose.xlu0.b32.cont [3/16] %v33, 128
    %50 = vxpose.xlu0.b32.cont [4/16] %v34, 128
    %51 = vxpose.xlu0.b32.cont [5/16] %v35, 128
    %52 = vxpose.xlu0.b32.cont [6/16] %v36, 128
    %53 = vxpose.xlu0.b32.cont [7/16] %v37, 128
    %54 = vxpose.xlu0.b32.cont [8/16] %v38, 128
    %55 = vxpose.xlu0.b32.cont [9/16] %v39, 128
    %56 = vxpose.xlu0.b32.cont [10/16] %v40, 128
    %57 = vxpose.xlu0.b32.cont [11/16] %v41, 128
    %58 = vxpose.xlu0.b32.cont [12/16] %v42, 128
    %59 = vxpose.xlu0.b32.cont [13/16] %v43, 128
    %60 = vxpose.xlu0.b32.cont [14/16] %v44, 128
    %61 = vxpose.xlu0.b32.cont [15/16] %v45, 128
    %62 = vxpose.xlu0.b32.end [16/16] %v46, 128
    %v63 = vpop.trf.xlu0
    %v64 = vpop.trf.xlu0
    %v65 = vpop.trf.xlu0
    %v66 = vpop.trf.xlu0
    %v67 = vpop.trf.xlu0
    %v68 = vpop.trf.xlu0
    %v69 = vpop.trf.xlu0
    %v70 = vpop.trf.xlu0
    %v71 = vpop.trf.xlu0
    %v72 = vpop.trf.xlu0
    %v73 = vpop.trf.xlu0
    %v74 = vpop.trf.xlu0
    %v75 = vpop.trf.xlu0
    %v76 = vpop.trf.xlu0
    %v77 = vpop.trf.xlu0
    %v78 = vpop.trf.xlu0
    %v79 = vld [vmem:[%s1] sm:$0xff]
    %v80 = vld [vmem:[%s1 + $0x8] sm:$0xff]
    %v81 = vld [vmem:[%s1 + $0x10] sm:$0xff]
    %v82 = vld [vmem:[%s1 + $0x18] sm:$0xff]
    %v83 = vld [vmem:[%s1 + $0x20] sm:$0xff]
    %v84 = vld [vmem:[%s1 + $0x28] sm:$0xff]
    %v85 = vld [vmem:[%s1 + $0x30] sm:$0xff]
    %v86 = vld [vmem:[%s1 + $0x38] sm:$0xff]
    %v87 = vld [vmem:[%s1 + $0x40] sm:$0xff]
    %v88 = vld [vmem:[%s1 + $0x48] sm:$0xff]
    %v89 = vld [vmem:[%s1 + $0x50] sm:$0xff]
    %v90 = vld [vmem:[%s1 + $0x58] sm:$0xff]
    %v91 = vld [vmem:[%s1 + $0x60] sm:$0xff]
    %v92 = vld [vmem:[%s1 + $0x68] sm:$0xff]
    %v93 = vld [vmem:[%s1 + $0x70] sm:$0xff]
    %v94 = vld [vmem:[%s1 + $0x78] sm:$0xff]
    %95 = vxpose.xlu0.b32.start [1/16] %v79, 128
    %96 = vxpose.xlu0.b32.cont [2/16] %v80, 128
    %97 = vxpose.xlu0.b32.cont [3/16] %v81, 128
    %98 = vxpose.xlu0.b32.cont [4/16] %v82, 128
    %99 = vxpose.xlu0.b32.cont [5/16] %v83, 128
    %100 = vxpose.xlu0.b32.cont [6/16] %v84, 128
    %101 = vxpose.xlu0.b32.cont [7/16] %v85, 128
    %102 = vxpose.xlu0.b32.cont [8/16] %v86, 128
    %103 = vxpose.xlu0.b32.cont [9/16] %v87, 128
    %104 = vxpose.xlu0.b32.cont [10/16] %v88, 128
    %105 = vxpose.xlu0.b32.cont [11/16] %v89, 128
    %106 = vxpose.xlu0.b32.cont [12/16] %v90, 128
    %107 = vxpose.xlu0.b32.cont [13/16] %v91, 128
    %108 = vxpose.xlu0.b32.cont [14/16] %v92, 128
    %109 = vxpose.xlu0.b32.cont [15/16] %v93, 128
    %110 = vxpose.xlu0.b32.end [16/16] %v94, 128
    %v111 = vpop.trf.xlu0
    %v112 = vpop.trf.xlu0
    %v113 = vpop.trf.xlu0
    %v114 = vpop.trf.xlu0
    %v115 = vpop.trf.xlu0
    %v116 = vpop.trf.xlu0
    %v117 = vpop.trf.xlu0
    %v118 = vpop.trf.xlu0
    %v119 = vpop.trf.xlu0
    %v120 = vpop.trf.xlu0
    %v121 = vpop.trf.xlu0
    %v122 = vpop.trf.xlu0
    %v123 = vpop.trf.xlu0
    %v124 = vpop.trf.xlu0
    %v125 = vpop.trf.xlu0
    %v126 = vpop.trf.xlu0
    %v127 = vld [vmem:[%s2] sm:$0xf]
    %v128 = vld [vmem:[%s2 + $0x4] sm:$0xf]
    %v129 = vld [vmem:[%s2 + $0x8] sm:$0xf]
    %v130 = vld [vmem:[%s2 + $0xc] sm:$0xf]
    %v131 = vld [vmem:[%s4] sm:$0xff]
    %v132 = vld [vmem:[%s4 + $0x8] sm:$0xff]
    %v133 = vld [vmem:[%s4 + $0x10] sm:$0xff]
    %v134 = vld [vmem:[%s4 + $0x18] sm:$0xff]
    %v135 = vld [vmem:[%s3] sm:$0xf]
    %v136 = vld [vmem:[%s3 + $0x4] sm:$0xf]
    %v137 = vld [vmem:[%s5] sm:$0xff]
    %v138 = vld [vmem:[%s5 + $0x8] sm:$0xff]
    %v139 = vpack.c.bf16 %v111, %v63
    %141 = vset.pattern.permute.xlu0 0
    %142 = vperm.xlu0 %141, %v131
    %v143 = vpop.permute.xlu0 %142
    %146 = vset.pattern.permute.xlu0 0
    %147 = vperm.xlu0 %146, %v132
    %v148 = vpop.permute.xlu0 %147
    %151 = vset.pattern.permute.xlu0 0
    %152 = vperm.xlu0 %151, %v133
    %v153 = vpop.permute.xlu0 %152
    %156 = vset.pattern.permute.xlu0 0
    %157 = vperm.xlu0 %156, %v134
    %v158 = vpop.permute.xlu0 %157
    %v164 = vunpack.c.l.b16 %v127
    %v165 = vunpack.c.l.b16 %v128
    %v166 = vunpack.c.l.b16 %v129
    %v167 = vunpack.c.l.b16 %v130
    %v168 = vpack.c.b16 %v165, %v164
    %v169 = vpack.c.b16 %v167, %v166
    %vm170 = vcmask 130048
    %v172 = vsel %vm170, %v168, 0
    %v175 = vsel %vm170, %v169, 0
    %177 = vmatprep.subr.bf16.mxu0 0
    %178 = vmatpush1.bf16.msra.mxu0 0
    %179 = vmatprep.subr.bf16.mxu0 0
    %180 = vmatpush1.bf16.msra.mxu0 0
    %181 = vmatprep.subr.bf16.mxu0 0
    %182 = vmatpush1.bf16.msra.mxu0 0
    %183 = vmatprep.subr.bf16.mxu0 0
    %184 = vmatpush1.bf16.msra.mxu0 0
    %185 = vmatprep.subr.bf16.mxu0 0
    %186 = vmatpush1.bf16.msra.mxu0 0
    %187 = vmatprep.subr.bf16.mxu0 0
    %188 = vmatpush1.bf16.msra.mxu0 0
    %189 = vmatprep.subr.bf16.mxu0 0
    %190 = vmatpush1.bf16.msra.mxu0 0
    %191 = vmatprep.subr.bf16.mxu0 0
    %192 = vmatpush1.bf16.msra.mxu0 %v139
    %193 = vmatprep.subr.bf16.mxu0 0
    %194 = vmatpush2.bf16.msra.mxu0 0
    %195 = vmatprep.subr.bf16.mxu0 0
    %196 = vmatpush2.bf16.msra.mxu0 0
    %197 = vmatprep.subr.bf16.mxu0 0
    %198 = vmatpush2.bf16.msra.mxu0 0
    %199 = vmatprep.subr.bf16.mxu0 0
    %200 = vmatpush2.bf16.msra.mxu0 0
    %201 = vmatprep.subr.bf16.mxu0 0
    %202 = vmatpush2.bf16.msra.mxu0 0
    %203 = vmatprep.subr.bf16.mxu0 0
    %204 = vmatpush2.bf16.msra.mxu0 0
    %205 = vmatprep.subr.bf16.mxu0 0
    %206 = vmatpush2.bf16.msra.mxu0 0
    %207 = vmatprep.subr.bf16.mxu0 0
    %208 = vmatpush2.bf16.msra.mxu0 0
    %209 = vmatprep.mubr.bf16.mxu0 0
    %210 = vmatmul.mubr.bf16.gmra.mxu0 %v172
    %v211 = vpop.f32.mrf.mxu0
    %v212 = vadd.f32 %v143, %v211
    %v213 = vpop.f32.mrf.mxu0
    %v214 = vpop.f32.mrf.mxu0
    %v215 = vadd.f32 %v148, %v214
    %v216 = vpop.f32.mrf.mxu0
    %217 = vmatprep.mubr.bf16.mxu0 0
    %218 = vmatmul.mubr.bf16.gmra.mxu0 %v175
    %v219 = vpop.f32.mrf.mxu0
    %v220 = vadd.f32 %v153, %v219
    %v221 = vpop.f32.mrf.mxu0
    %v222 = vpop.f32.mrf.mxu0
    %v223 = vadd.f32 %v158, %v222
    %v224 = vpop.f32.mrf.mxu0
    %225 = vdwg.mxu0
    %v226 = vmax.f32 %v212, 0.0
    %v227 = vmax.f32 %v215, 0.0
    %v228 = vmax.f32 %v220, 0.0
    %v229 = vmax.f32 %v223, 0.0
    %v230 = vpack.c.bf16 %v227, %v226
    %v231 = vpack.c.bf16 %v229, %v228
    %233 = vset.pattern.permute.xlu0 0
    %234 = vperm.xlu0 %233, %v137
    %v235 = vpop.permute.xlu0 %234
    %238 = vset.pattern.permute.xlu0 0
    %239 = vperm.xlu0 %238, %v138
    %v240 = vpop.permute.xlu0 %239
    %v244 = vunpack.c.l.b16 %v135
    %v245 = vunpack.c.l.b16 %v136
    %v246 = vpack.c.b16 %v245, %v244
    %vm247 = vcmask 261120
    %v249 = vsel %vm247, %v246, 0
    %251 = vmatprep.subr.bf16.mxu0 0
    %252 = vmatpush1.bf16.msra.mxu0 0
    %253 = vmatprep.subr.bf16.mxu0 0
    %254 = vmatpush1.bf16.msra.mxu0 0
    %255 = vmatprep.subr.bf16.mxu0 0
    %256 = vmatpush1.bf16.msra.mxu0 0
    %257 = vmatprep.subr.bf16.mxu0 0
    %258 = vmatpush1.bf16.msra.mxu0 0
    %259 = vmatprep.subr.bf16.mxu0 0
    %260 = vmatpush1.bf16.msra.mxu0 0
    %261 = vmatprep.subr.bf16.mxu0 0
    %262 = vmatpush1.bf16.msra.mxu0 0
    %263 = vmatprep.subr.bf16.mxu0 0
    %264 = vmatpush1.bf16.msra.mxu0 %v231
    %265 = vmatprep.subr.bf16.mxu0 0
    %266 = vmatpush1.bf16.msra.mxu0 %v230
    %267 = vmatprep.subr.bf16.mxu0 0
    %268 = vmatpush2.bf16.msra.mxu0 0
    %269 = vmatprep.subr.bf16.mxu0 0
    %270 = vmatpush2.bf16.msra.mxu0 0
    %271 = vmatprep.subr.bf16.mxu0 0
    %272 = vmatpush2.bf16.msra.mxu0 0
    %273 = vmatprep.subr.bf16.mxu0 0
    %274 = vmatpush2.bf16.msra.mxu0 0
    %275 = vmatprep.subr.bf16.mxu0 0
    %276 = vmatpush2.bf16.msra.mxu0 0
    %277 = vmatprep.subr.bf16.mxu0 0
    %278 = vmatpush2.bf16.msra.mxu0 0
    %279 = vmatprep.subr.bf16.mxu0 0
    %280 = vmatpush2.bf16.msra.mxu0 0
    %281 = vmatprep.subr.bf16.mxu0 0
    %282 = vmatpush2.bf16.msra.mxu0 0
    %283 = vmatprep.mubr.bf16.mxu0 0
    %284 = vmatmul.mubr.bf16.gmra.mxu0 %v249
    %v285 = vpop.f32.mrf.mxu0
    %v286 = vadd.f32 %v235, %v285
    %v287 = vpop.f32.mrf.mxu0
    %v288 = vpop.f32.mrf.mxu0
    %v289 = vadd.f32 %v240, %v288
    %v290 = vpop.f32.mrf.mxu0
    %291 = vdwg.mxu0
    %s292 = scalar_lea.vmem %s2, 16
    %v293 = vld [vmem:[%s292] sm:$0xf]
    %v294 = vld [vmem:[%s292 + $0x4] sm:$0xf]
    %v295 = vld [vmem:[%s292 + $0x8] sm:$0xf]
    %v296 = vld [vmem:[%s292 + $0xc] sm:$0xf]
    %s297 = scalar_lea.vmem %s3, 8
    %v298 = vld [vmem:[%s297] sm:$0xf]
    %v299 = vld [vmem:[%s297 + $0x4] sm:$0xf]
    %v300 = vpack.c.bf16 %v289, %v286
    %301 = vset.pattern.permute.xlu0 1
    %302 = vperm.xlu0 %301, %v131
    %v303 = vpop.permute.xlu0 %302
    %305 = vset.pattern.permute.xlu0 1
    %306 = vperm.xlu0 %305, %v132
    %v307 = vpop.permute.xlu0 %306
    %309 = vset.pattern.permute.xlu0 1
    %310 = vperm.xlu0 %309, %v133
    %v311 = vpop.permute.xlu0 %310
    %313 = vset.pattern.permute.xlu0 1
    %314 = vperm.xlu0 %313, %v134
    %v315 = vpop.permute.xlu0 %314
    %v321 = vunpack.c.l.b16 %v293
    %v322 = vunpack.c.l.b16 %v294
    %v323 = vunpack.c.l.b16 %v295
    %v324 = vunpack.c.l.b16 %v296
    %v325 = vpack.c.b16 %v322, %v321
    %v326 = vpack.c.b16 %v324, %v323
    %v328 = vsel %vm170, %v325, 0
    %v331 = vsel %vm170, %v326, 0
    %333 = vmatprep.subr.bf16.mxu0 0
    %334 = vmatpush1.bf16.msra.mxu0 0
    %335 = vmatprep.subr.bf16.mxu0 0
    %336 = vmatpush1.bf16.msra.mxu0 0
    %337 = vmatprep.subr.bf16.mxu0 0
    %338 = vmatpush1.bf16.msra.mxu0 0
    %339 = vmatprep.subr.bf16.mxu0 0
    %340 = vmatpush1.bf16.msra.mxu0 0
    %341 = vmatprep.subr.bf16.mxu0 0
    %342 = vmatpush1.bf16.msra.mxu0 0
    %343 = vmatprep.subr.bf16.mxu0 0
    %344 = vmatpush1.bf16.msra.mxu0 0
    %345 = vmatprep.subr.bf16.mxu0 0
    %346 = vmatpush1.bf16.msra.mxu0 0
    %347 = vmatprep.subr.bf16.mxu0 0
    %348 = vmatpush1.bf16.msra.mxu0 %v300
    %349 = vmatprep.subr.bf16.mxu0 0
    %350 = vmatpush2.bf16.msra.mxu0 0
    %351 = vmatprep.subr.bf16.mxu0 0
    %352 = vmatpush2.bf16.msra.mxu0 0
    %353 = vmatprep.subr.bf16.mxu0 0
    %354 = vmatpush2.bf16.msra.mxu0 0
    %355 = vmatprep.subr.bf16.mxu0 0
    %356 = vmatpush2.bf16.msra.mxu0 0
    %357 = vmatprep.subr.bf16.mxu0 0
    %358 = vmatpush2.bf16.msra.mxu0 0
    %359 = vmatprep.subr.bf16.mxu0 0
    %360 = vmatpush2.bf16.msra.mxu0 0
    %361 = vmatprep.subr.bf16.mxu0 0
    %362 = vmatpush2.bf16.msra.mxu0 0
    %363 = vmatprep.subr.bf16.mxu0 0
    %364 = vmatpush2.bf16.msra.mxu0 0
    %365 = vmatprep.mubr.bf16.mxu0 0
    %366 = vmatmul.mubr.bf16.gmra.mxu0 %v328
    %v367 = vpop.f32.mrf.mxu0
    %v368 = vadd.f32 %v303, %v367
    %v369 = vpop.f32.mrf.mxu0
    %v370 = vpop.f32.mrf.mxu0
    %v371 = vadd.f32 %v307, %v370
    %v372 = vpop.f32.mrf.mxu0
    %373 = vmatprep.mubr.bf16.mxu0 0
    %374 = vmatmul.mubr.bf16.gmra.mxu0 %v331
    %v375 = vpop.f32.mrf.mxu0
    %v376 = vadd.f32 %v311, %v375
    %v377 = vpop.f32.mrf.mxu0
    %v378 = vpop.f32.mrf.mxu0
    %v379 = vadd.f32 %v315, %v378
    %v380 = vpop.f32.mrf.mxu0
    %381 = vdwg.mxu0
    %v382 = vmax.f32 %v368, 0.0
    %v383 = vmax.f32 %v371, 0.0
    %v384 = vmax.f32 %v376, 0.0
    %v385 = vmax.f32 %v379, 0.0
    %v386 = vpack.c.bf16 %v383, %v382
    %v387 = vpack.c.bf16 %v385, %v384
    %388 = vset.pattern.permute.xlu0 1
    %389 = vperm.xlu0 %388, %v137
    %v390 = vpop.permute.xlu0 %389
    %392 = vset.pattern.permute.xlu0 1
    %393 = vperm.xlu0 %392, %v138
    %v394 = vpop.permute.xlu0 %393
    %v398 = vunpack.c.l.b16 %v298
    %v399 = vunpack.c.l.b16 %v299
    %v400 = vpack.c.b16 %v399, %v398
    %v402 = vsel %vm247, %v400, 0
    %404 = vmatprep.subr.bf16.mxu0 0
    %405 = vmatpush1.bf16.msra.mxu0 0
    %406 = vmatprep.subr.bf16.mxu0 0
    %407 = vmatpush1.bf16.msra.mxu0 0
    %408 = vmatprep.subr.bf16.mxu0 0
    %409 = vmatpush1.bf16.msra.mxu0 0
    %410 = vmatprep.subr.bf16.mxu0 0
    %411 = vmatpush1.bf16.msra.mxu0 0
    %412 = vmatprep.subr.bf16.mxu0 0
    %413 = vmatpush1.bf16.msra.mxu0 0
    %414 = vmatprep.subr.bf16.mxu0 0
    %415 = vmatpush1.bf16.msra.mxu0 0
    %416 = vmatprep.subr.bf16.mxu0 0
    %417 = vmatpush1.bf16.msra.mxu0 %v387
    %418 = vmatprep.subr.bf16.mxu0 0
    %419 = vmatpush1.bf16.msra.mxu0 %v386
    %420 = vmatprep.subr.bf16.mxu0 0
    %421 = vmatpush2.bf16.msra.mxu0 0
    %422 = vmatprep.subr.bf16.mxu0 0
    %423 = vmatpush2.bf16.msra.mxu0 0
    %424 = vmatprep.subr.bf16.mxu0 0
    %425 = vmatpush2.bf16.msra.mxu0 0
    %426 = vmatprep.subr.bf16.mxu0 0
    %427 = vmatpush2.bf16.msra.mxu0 0
    %428 = vmatprep.subr.bf16.mxu0 0
    %429 = vmatpush2.bf16.msra.mxu0 0
    %430 = vmatprep.subr.bf16.mxu0 0
    %431 = vmatpush2.bf16.msra.mxu0 0
    %432 = vmatprep.subr.bf16.mxu0 0
    %433 = vmatpush2.bf16.msra.mxu0 0
    %434 = vmatprep.subr.bf16.mxu0 0
    %435 = vmatpush2.bf16.msra.mxu0 0
    %436 = vmatprep.mubr.bf16.mxu0 0
    %437 = vmatmul.mubr.bf16.gmra.mxu0 %v402
    %v438 = vpop.f32.mrf.mxu0
    %v439 = vadd.f32 %v390, %v438
    %v440 = vpop.f32.mrf.mxu0
    %v441 = vpop.f32.mrf.mxu0
    %v442 = vadd.f32 %v394, %v441
    %v443 = vpop.f32.mrf.mxu0
    %444 = vdwg.mxu0
    %v445 = vadd.f32 %v63, %v439
    %v446 = vadd.f32 %v111, %v442
    %s447 = scalar_lea.vmem %s2, 32
    %v448 = vld [vmem:[%s447] sm:$0xf]
    %v449 = vld [vmem:[%s447 + $0x4] sm:$0xf]
    %v450 = vld [vmem:[%s447 + $0x8] sm:$0xf]
    %v451 = vld [vmem:[%s447 + $0xc] sm:$0xf]
    %s452 = scalar_lea.vmem %s3, 16
    %v453 = vld [vmem:[%s452] sm:$0xf]
    %v454 = vld [vmem:[%s452 + $0x4] sm:$0xf]
    %v455 = vpack.c.bf16 %v446, %v445
    %456 = vset.pattern.permute.xlu0 2
    %457 = vperm.xlu0 %456, %v131
    %v458 = vpop.permute.xlu0 %457
    %460 = vset.pattern.permute.xlu0 2
    %461 = vperm.xlu0 %460, %v132
    %v462 = vpop.permute.xlu0 %461
    %464 = vset.pattern.permute.xlu0 2
    %465 = vperm.xlu0 %464, %v133
    %v466 = vpop.permute.xlu0 %465
    %468 = vset.pattern.permute.xlu0 2
    %469 = vperm.xlu0 %468, %v134
    %v470 = vpop.permute.xlu0 %469
    %v476 = vunpack.c.l.b16 %v448
    %v477 = vunpack.c.l.b16 %v449
    %v478 = vunpack.c.l.b16 %v450
    %v479 = vunpack.c.l.b16 %v451
    %v480 = vpack.c.b16 %v477, %v476
    %v481 = vpack.c.b16 %v479, %v478
    %v483 = vsel %vm170, %v480, 0
    %v486 = vsel %vm170, %v481, 0
    %488 = vmatprep.subr.bf16.mxu0 0
    %489 = vmatpush1.bf16.msra.mxu0 0
    %490 = vmatprep.subr.bf16.mxu0 0
    %491 = vmatpush1.bf16.msra.mxu0 0
    %492 = vmatprep.subr.bf16.mxu0 0
    %493 = vmatpush1.bf16.msra.mxu0 0
    %494 = vmatprep.subr.bf16.mxu0 0
    %495 = vmatpush1.bf16.msra.mxu0 0
    %496 = vmatprep.subr.bf16.mxu0 0
    %497 = vmatpush1.bf16.msra.mxu0 0
    %498 = vmatprep.subr.bf16.mxu0 0
    %499 = vmatpush1.bf16.msra.mxu0 0
    %500 = vmatprep.subr.bf16.mxu0 0
    %501 = vmatpush1.bf16.msra.mxu0 0
    %502 = vmatprep.subr.bf16.mxu0 0
    %503 = vmatpush1.bf16.msra.mxu0 %v455
    %504 = vmatprep.subr.bf16.mxu0 0
    %505 = vmatpush2.bf16.msra.mxu0 0
    %506 = vmatprep.subr.bf16.mxu0 0
    %507 = vmatpush2.bf16.msra.mxu0 0
    %508 = vmatprep.subr.bf16.mxu0 0
    %509 = vmatpush2.bf16.msra.mxu0 0
    %510 = vmatprep.subr.bf16.mxu0 0
    %511 = vmatpush2.bf16.msra.mxu0 0
    %512 = vmatprep.subr.bf16.mxu0 0
    %513 = vmatpush2.bf16.msra.mxu0 0
    %514 = vmatprep.subr.bf16.mxu0 0
    %515 = vmatpush2.bf16.msra.mxu0 0
    %516 = vmatprep.subr.bf16.mxu0 0
    %517 = vmatpush2.bf16.msra.mxu0 0
    %518 = vmatprep.subr.bf16.mxu0 0
    %519 = vmatpush2.bf16.msra.mxu0 0
    %520 = vmatprep.mubr.bf16.mxu0 0
    %521 = vmatmul.mubr.bf16.gmra.mxu0 %v483
    %v522 = vpop.f32.mrf.mxu0
    %v523 = vadd.f32 %v458, %v522
    %v524 = vpop.f32.mrf.mxu0
    %v525 = vpop.f32.mrf.mxu0
    %v526 = vadd.f32 %v462, %v525
    %v527 = vpop.f32.mrf.mxu0
    %528 = vmatprep.mubr.bf16.mxu0 0
    %529 = vmatmul.mubr.bf16.gmra.mxu0 %v486
    %v530 = vpop.f32.mrf.mxu0
    %v531 = vadd.f32 %v466, %v530
    %v532 = vpop.f32.mrf.mxu0
    %v533 = vpop.f32.mrf.mxu0
    %v534 = vadd.f32 %v470, %v533
    %v535 = vpop.f32.mrf.mxu0
    %536 = vdwg.mxu0
    %v537 = vmax.f32 %v523, 0.0
    %v538 = vmax.f32 %v526, 0.0
    %v539 = vmax.f32 %v531, 0.0
    %v540 = vmax.f32 %v534, 0.0
    %v541 = vpack.c.bf16 %v538, %v537
    %v542 = vpack.c.bf16 %v540, %v539
    %543 = vset.pattern.permute.xlu0 2
    %544 = vperm.xlu0 %543, %v137
    %v545 = vpop.permute.xlu0 %544
    %547 = vset.pattern.permute.xlu0 2
    %548 = vperm.xlu0 %547, %v138
    %v549 = vpop.permute.xlu0 %548
    %v553 = vunpack.c.l.b16 %v453
    %v554 = vunpack.c.l.b16 %v454
    %v555 = vpack.c.b16 %v554, %v553
    %v557 = vsel %vm247, %v555, 0
    %559 = vmatprep.subr.bf16.mxu0 0
    %560 = vmatpush1.bf16.msra.mxu0 0
    %561 = vmatprep.subr.bf16.mxu0 0
    %562 = vmatpush1.bf16.msra.mxu0 0
    %563 = vmatprep.subr.bf16.mxu0 0
    %564 = vmatpush1.bf16.msra.mxu0 0
    %565 = vmatprep.subr.bf16.mxu0 0
    %566 = vmatpush1.bf16.msra.mxu0 0
    %567 = vmatprep.subr.bf16.mxu0 0
    %568 = vmatpush1.bf16.msra.mxu0 0
    %569 = vmatprep.subr.bf16.mxu0 0
    %570 = vmatpush1.bf16.msra.mxu0 0
    %571 = vmatprep.subr.bf16.mxu0 0
    %572 = vmatpush1.bf16.msra.mxu0 %v542
    %573 = vmatprep.subr.bf16.mxu0 0
    %574 = vmatpush1.bf16.msra.mxu0 %v541
    %575 = vmatprep.subr.bf16.mxu0 0
    %576 = vmatpush2.bf16.msra.mxu0 0
    %577 = vmatprep.subr.bf16.mxu0 0
    %578 = vmatpush2.bf16.msra.mxu0 0
    %579 = vmatprep.subr.bf16.mxu0 0
    %580 = vmatpush2.bf16.msra.mxu0 0
    %581 = vmatprep.subr.bf16.mxu0 0
    %582 = vmatpush2.bf16.msra.mxu0 0
    %583 = vmatprep.subr.bf16.mxu0 0
    %584 = vmatpush2.bf16.msra.mxu0 0
    %585 = vmatprep.subr.bf16.mxu0 0
    %586 = vmatpush2.bf16.msra.mxu0 0
    %587 = vmatprep.subr.bf16.mxu0 0
    %588 = vmatpush2.bf16.msra.mxu0 0
    %589 = vmatprep.subr.bf16.mxu0 0
    %590 = vmatpush2.bf16.msra.mxu0 0
    %591 = vmatprep.mubr.bf16.mxu0 0
    %592 = vmatmul.mubr.bf16.gmra.mxu0 %v557
    %v593 = vpop.f32.mrf.mxu0
    %v594 = vadd.f32 %v545, %v593
    %v595 = vpop.f32.mrf.mxu0
    %v596 = vpop.f32.mrf.mxu0
    %v597 = vadd.f32 %v549, %v596
    %v598 = vpop.f32.mrf.mxu0
    %599 = vdwg.mxu0
    %s600 = scalar_lea.vmem %s2, 48
    %v601 = vld [vmem:[%s600] sm:$0xf]
    %v602 = vld [vmem:[%s600 + $0x4] sm:$0xf]
    %v603 = vld [vmem:[%s600 + $0x8] sm:$0xf]
    %v604 = vld [vmem:[%s600 + $0xc] sm:$0xf]
    %s605 = scalar_lea.vmem %s3, 24
    %v606 = vld [vmem:[%s605] sm:$0xf]
    %v607 = vld [vmem:[%s605 + $0x4] sm:$0xf]
    %v608 = vpack.c.bf16 %v597, %v594
    %609 = vset.pattern.permute.xlu0 3
    %610 = vperm.xlu0 %609, %v131
    %v611 = vpop.permute.xlu0 %610
    %613 = vset.pattern.permute.xlu0 3
    %614 = vperm.xlu0 %613, %v132
    %v615 = vpop.permute.xlu0 %614
    %617 = vset.pattern.permute.xlu0 3
    %618 = vperm.xlu0 %617, %v133
    %v619 = vpop.permute.xlu0 %618
    %621 = vset.pattern.permute.xlu0 3
    %622 = vperm.xlu0 %621, %v134
    %v623 = vpop.permute.xlu0 %622
    %v629 = vunpack.c.l.b16 %v601
    %v630 = vunpack.c.l.b16 %v602
    %v631 = vunpack.c.l.b16 %v603
    %v632 = vunpack.c.l.b16 %v604
    %v633 = vpack.c.b16 %v630, %v629
    %v634 = vpack.c.b16 %v632, %v631
    %v636 = vsel %vm170, %v633, 0
    %v639 = vsel %vm170, %v634, 0
    %641 = vmatprep.subr.bf16.mxu0 0
    %642 = vmatpush1.bf16.msra.mxu0 0
    %643 = vmatprep.subr.bf16.mxu0 0
    %644 = vmatpush1.bf16.msra.mxu0 0
    %645 = vmatprep.subr.bf16.mxu0 0
    %646 = vmatpush1.bf16.msra.mxu0 0
    %647 = vmatprep.subr.bf16.mxu0 0
    %648 = vmatpush1.bf16.msra.mxu0 0
    %649 = vmatprep.subr.bf16.mxu0 0
    %650 = vmatpush1.bf16.msra.mxu0 0
    %651 = vmatprep.subr.bf16.mxu0 0
    %652 = vmatpush1.bf16.msra.mxu0 0
    %653 = vmatprep.subr.bf16.mxu0 0
    %654 = vmatpush1.bf16.msra.mxu0 0
    %655 = vmatprep.subr.bf16.mxu0 0
    %656 = vmatpush1.bf16.msra.mxu0 %v608
    %657 = vmatprep.subr.bf16.mxu0 0
    %658 = vmatpush2.bf16.msra.mxu0 0
    %659 = vmatprep.subr.bf16.mxu0 0
    %660 = vmatpush2.bf16.msra.mxu0 0
    %661 = vmatprep.subr.bf16.mxu0 0
    %662 = vmatpush2.bf16.msra.mxu0 0
    %663 = vmatprep.subr.bf16.mxu0 0
    %664 = vmatpush2.bf16.msra.mxu0 0
    %665 = vmatprep.subr.bf16.mxu0 0
    %666 = vmatpush2.bf16.msra.mxu0 0
    %667 = vmatprep.subr.bf16.mxu0 0
    %668 = vmatpush2.bf16.msra.mxu0 0
    %669 = vmatprep.subr.bf16.mxu0 0
    %670 = vmatpush2.bf16.msra.mxu0 0
    %671 = vmatprep.subr.bf16.mxu0 0
    %672 = vmatpush2.bf16.msra.mxu0 0
    %673 = vmatprep.mubr.bf16.mxu0 0
    %674 = vmatmul.mubr.bf16.gmra.mxu0 %v636
    %v675 = vpop.f32.mrf.mxu0
    %v676 = vadd.f32 %v611, %v675
    %v677 = vpop.f32.mrf.mxu0
    %v678 = vpop.f32.mrf.mxu0
    %v679 = vadd.f32 %v615, %v678
    %v680 = vpop.f32.mrf.mxu0
    %681 = vmatprep.mubr.bf16.mxu0 0
    %682 = vmatmul.mubr.bf16.gmra.mxu0 %v639
    %v683 = vpop.f32.mrf.mxu0
    %v684 = vadd.f32 %v619, %v683
    %v685 = vpop.f32.mrf.mxu0
    %v686 = vpop.f32.mrf.mxu0
    %v687 = vadd.f32 %v623, %v686
    %v688 = vpop.f32.mrf.mxu0
    %689 = vdwg.mxu0
    %v690 = vmax.f32 %v676, 0.0
    %v691 = vmax.f32 %v679, 0.0
    %v692 = vmax.f32 %v684, 0.0
    %v693 = vmax.f32 %v687, 0.0
    %v694 = vpack.c.bf16 %v691, %v690
    %v695 = vpack.c.bf16 %v693, %v692
    %696 = vset.pattern.permute.xlu0 3
    %697 = vperm.xlu0 %696, %v137
    %v698 = vpop.permute.xlu0 %697
    %700 = vset.pattern.permute.xlu0 3
    %701 = vperm.xlu0 %700, %v138
    %v702 = vpop.permute.xlu0 %701
    %v706 = vunpack.c.l.b16 %v606
    %v707 = vunpack.c.l.b16 %v607
    %v708 = vpack.c.b16 %v707, %v706
    %v710 = vsel %vm247, %v708, 0
    %712 = vmatprep.subr.bf16.mxu0 0
    %713 = vmatpush1.bf16.msra.mxu0 0
    %714 = vmatprep.subr.bf16.mxu0 0
    %715 = vmatpush1.bf16.msra.mxu0 0
    %716 = vmatprep.subr.bf16.mxu0 0
    %717 = vmatpush1.bf16.msra.mxu0 0
    %718 = vmatprep.subr.bf16.mxu0 0
    %719 = vmatpush1.bf16.msra.mxu0 0
    %720 = vmatprep.subr.bf16.mxu0 0
    %721 = vmatpush1.bf16.msra.mxu0 0
    %722 = vmatprep.subr.bf16.mxu0 0
    %723 = vmatpush1.bf16.msra.mxu0 0
    %724 = vmatprep.subr.bf16.mxu0 0
    %725 = vmatpush1.bf16.msra.mxu0 %v695
    %726 = vmatprep.subr.bf16.mxu0 0
    %727 = vmatpush1.bf16.msra.mxu0 %v694
    %728 = vmatprep.subr.bf16.mxu0 0
    %729 = vmatpush2.bf16.msra.mxu0 0
    %730 = vmatprep.subr.bf16.mxu0 0
    %731 = vmatpush2.bf16.msra.mxu0 0
    %732 = vmatprep.subr.bf16.mxu0 0
    %733 = vmatpush2.bf16.msra.mxu0 0
    %734 = vmatprep.subr.bf16.mxu0 0
    %735 = vmatpush2.bf16.msra.mxu0 0
    %736 = vmatprep.subr.bf16.mxu0 0
    %737 = vmatpush2.bf16.msra.mxu0 0
    %738 = vmatprep.subr.bf16.mxu0 0
    %739 = vmatpush2.bf16.msra.mxu0 0
    %740 = vmatprep.subr.bf16.mxu0 0
    %741 = vmatpush2.bf16.msra.mxu0 0
    %742 = vmatprep.subr.bf16.mxu0 0
    %743 = vmatpush2.bf16.msra.mxu0 0
    %744 = vmatprep.mubr.bf16.mxu0 0
    %745 = vmatmul.mubr.bf16.gmra.mxu0 %v710
    %v746 = vpop.f32.mrf.mxu0
    %v747 = vadd.f32 %v698, %v746
    %v748 = vpop.f32.mrf.mxu0
    %v749 = vpop.f32.mrf.mxu0
    %v750 = vadd.f32 %v702, %v749
    %v751 = vpop.f32.mrf.mxu0
    %752 = vdwg.mxu0
    %v753 = vadd.f32 %v445, %v747
    %v754 = vadd.f32 %v446, %v750
    %v755 = vld [vmem:[%s6] sm:$0xf]
    %v756 = vpack.c.bf16 %v754, %v753
    %v757 = vld [vmem:[%s7] sm:$0xff]
    %759 = vset.pattern.permute.xlu0 0
    %760 = vperm.xlu0 %759, %v757
    %v761 = vpop.permute.xlu0 %760
    %v764 = vsel %vm170, %v755, 0
    %766 = vmatprep.subr.bf16.mxu0 0
    %767 = vmatpush1.bf16.msra.mxu0 0
    %768 = vmatprep.subr.bf16.mxu0 0
    %769 = vmatpush1.bf16.msra.mxu0 0
    %770 = vmatprep.subr.bf16.mxu0 0
    %771 = vmatpush1.bf16.msra.mxu0 0
    %772 = vmatprep.subr.bf16.mxu0 0
    %773 = vmatpush1.bf16.msra.mxu0 0
    %774 = vmatprep.subr.bf16.mxu0 0
    %775 = vmatpush1.bf16.msra.mxu0 0
    %776 = vmatprep.subr.bf16.mxu0 0
    %777 = vmatpush1.bf16.msra.mxu0 0
    %778 = vmatprep.subr.bf16.mxu0 0
    %779 = vmatpush1.bf16.msra.mxu0 0
    %780 = vmatprep.subr.bf16.mxu0 0
    %781 = vmatpush1.bf16.msra.mxu0 %v756
    %782 = vmatprep.subr.bf16.mxu0 0
    %783 = vmatpush2.bf16.msra.mxu0 0
    %784 = vmatprep.subr.bf16.mxu0 0
    %785 = vmatpush2.bf16.msra.mxu0 0
    %786 = vmatprep.subr.bf16.mxu0 0
    %787 = vmatpush2.bf16.msra.mxu0 0
    %788 = vmatprep.subr.bf16.mxu0 0
    %789 = vmatpush2.bf16.msra.mxu0 0
    %790 = vmatprep.subr.bf16.mxu0 0
    %791 = vmatpush2.bf16.msra.mxu0 0
    %792 = vmatprep.subr.bf16.mxu0 0
    %793 = vmatpush2.bf16.msra.mxu0 0
    %794 = vmatprep.subr.bf16.mxu0 0
    %795 = vmatpush2.bf16.msra.mxu0 0
    %796 = vmatprep.subr.bf16.mxu0 0
    %797 = vmatpush2.bf16.msra.mxu0 0
    %798 = vmatprep.mubr.bf16.mxu0 0
    %799 = vmatmul.mubr.bf16.gmra.mxu0 %v764
    %v800 = vpop.f32.mrf.mxu0
    %v801 = vadd.f32 %v761, %v800
    %v802 = vpop.f32.mrf.mxu0
    %v803 = vpop.f32.mrf.mxu0
    %v804 = vpop.f32.mrf.mxu0
    %805 = vdwg.mxu0
    %v806 = vmul.f32 %v801, %v111
    %vm807 = vcmp.eq.f32.partialorder %v806, 0.0
    %v808 = vsel %vm807, -1e+20, %v806
    %809 = vst [vmem:[#allocation2] sm:$0xff] %v808
    // Predicated region
    $region34: #{tpu_custom_call.1} parent=1 // pred_check
      _
    $region35: #{tpu_custom_call.1} parent=1 // pred_check_branch
      %811 = sbr.rel (0) target = $region37
    $region36: #{tpu_custom_call.1} parent=1 // pred_region
      %s813 = ssub.s32 128, 128
      %814 = vsyncadd [#allocation3], %s813
      %s816 = sshll.u32 [#allocation2], 4
      %s817 = int_to_ptr.vmem [resolvable:$true] %s816
      %819 = dma.vmem_to_hbm [thread:$0]  %s817, 128, %s8, [#allocation3]
    $region37: #{tpu_custom_call.1} parent=1 // pred_fallthru
      _
    // Predicated region
    $region38: #{tpu_custom_call.1} parent=1 // pred_check
      _
    $region39: #{tpu_custom_call.1} parent=1 // pred_check_branch
      %821 = sbr.rel (0) target = $region41
    $region40: #{tpu_custom_call.1} parent=1 // pred_region
      %822 = dma.done [#allocation3], 128
    $region41: #{tpu_custom_call.1} parent=1 // pred_fallthru
      _
    %823 = vsyncpa [#allocation3], 1

// kernel: tpu_custom_call.1
$region0: #{tpu_custom_call.1}
  #allocation0 [shape = 'u32[]', space=smem, size = 0x4, offset = 0x4, fixed_abs, tag = 'smem constant byte address 0x4 - core index']
  #allocation1 [shape = 'u32[144,128]{1,0:T(1,128)}', space=vmem, size = 0x12000, scoped, tag = 'internal scratch']
  %s0 = inlined_call_operand.vmem [shape: f32[128,8], index: 0, kind: input, shape index: {}]
  %s1 = inlined_call_operand.vmem [shape: f32[128,8], index: 1, kind: input, shape index: {}]
  %s2 = inlined_call_operand.vmem [shape: bf16[4,32,16], index: 2, kind: input, shape index: {}]
  %s3 = inlined_call_operand.vmem [shape: bf16[4,16,32], index: 3, kind: input, shape index: {}]
  %s4 = inlined_call_operand.vmem [shape: f32[32,4], index: 4, kind: input, shape index: {}]
  %s5 = inlined_call_operand.vmem [shape: f32[16,4], index: 5, kind: input, shape index: {}]
  %s6 = inlined_call_operand.vmem [shape: bf16[8,16], index: 6, kind: input, shape index: {}]
  %s7 = inlined_call_operand.vmem [shape: f32[8,1], index: 7, kind: input, shape index: {}]
  %s8 = inlined_call_operand.hbm [shape: f32[8,128], index: 8, kind: output, shape index: {}]
  %s9 = sld [smem:[#allocation0]]
  $region42: #{tpu_custom_call.1} parent=0
    _
  %s11 = ssub.s32 1, %s9
  %s12 = scalar_select 0, %s11, %s9
  $region1: #{tpu_custom_call.1} parent=0
    #allocation2 [shape = 'u8[4096]{0}', space=vmem, size = 0x1000, scoped, tag = 'output window, operand 0, single buffered']
    #allocation3 [shape = 's32[1]{0}', space=sflag, size = 0x4, scoped, tag = 'scoped memory for tpu_custom_call.1']
    %13 = vsyncpa [#allocation3], 0
    // Predicated region
    $region2: #{tpu_custom_call.1} parent=1 // pred_check
      _
    $region3: #{tpu_custom_call.1} parent=1 // pred_check_branch
      %15 = sbr.rel (0) target = $region5
    $region4: #{tpu_custom_call.1} parent=1 // pred_region
      _
    $region5: #{tpu_custom_call.1} parent=1 // pred_fallthru
      _
    // Predicated region
    $region6: #{tpu_custom_call.1} parent=1 // pred_check
      _
    $region7: #{tpu_custom_call.1} parent=1 // pred_check_branch
      %17 = sbr.rel (0) target = $region9
    $region8: #{tpu_custom_call.1} parent=1 // pred_region
      _
    $region9: #{tpu_custom_call.1} parent=1 // pred_fallthru
      _
    // Predicated region
    $region10: #{tpu_custom_call.1} parent=1 // pred_check
      _
    $region11: #{tpu_custom_call.1} parent=1 // pred_check_branch
      %19 = sbr.rel (0) target = $region13
    $region12: #{tpu_custom_call.1} parent=1 // pred_region
      _
    $region13: #{tpu_custom_call.1} parent=1 // pred_fallthru
      _
    // Predicated region
    $region14: #{tpu_custom_call.1} parent=1 // pred_check
      _
    $region15: #{tpu_custom_call.1} parent=1 // pred_check_branch
      %21 = sbr.rel (0) target = $region17
    $region16: #{tpu_custom_call.1} parent=1 // pred_region
      _
    $region17: #{tpu_custom_call.1} parent=1 // pred_fallthru
      _
    // Predicated region
    $region18: #{tpu_custom_call.1} parent=1 // pred_check
      _
    $region19: #{tpu_custom_call.1} parent=1 // pred_check_branch
      %23 = sbr.rel (0) target = $region21
    $region20: #{tpu_custom_call.1} parent=1 // pred_region
      _
    $region21: #{tpu_custom_call.1} parent=1 // pred_fallthru
      _
    // Predicated region
    $region22: #{tpu_custom_call.1} parent=1 // pred_check
      _
    $region23: #{tpu_custom_call.1} parent=1 // pred_check_branch
      %25 = sbr.rel (0) target = $region25
    $region24: #{tpu_custom_call.1} parent=1 // pred_region
      _
    $region25: #{tpu_custom_call.1} parent=1 // pred_fallthru
      _
    // Predicated region
    $region26: #{tpu_custom_call.1} parent=1 // pred_check
      _
    $region27: #{tpu_custom_call.1} parent=1 // pred_check_branch
      %27 = sbr.rel (0) target = $region29
    $region28: #{tpu_custom_call.1} parent=1 // pred_region
      _
    $region29: #{tpu_custom_call.1} parent=1 // pred_fallthru
      _
    // Predicated region
    $region30: #{tpu_custom_call.1} parent=1 // pred_check
      _
    $region31: #{tpu_custom_call.1} parent=1 // pred_check_branch
      %29 = sbr.rel (0) target = $region33
    $region32: #{tpu_custom_call.1} parent=1 // pred_region
      _
    $region33: #{tpu_custom_call.1} parent=1 // pred_fallthru
      _
    %v31 = vld [vmem:[%s0] sm:$0xff]
    %v32 = vld [vmem:[%s0 + $0x8] sm:$0xff]
    %v33 = vld [vmem:[%s0 + $0x10] sm:$0xff]
    %v34 = vld [vmem:[%s0 + $0x18] sm:$0xff]
    %v35 = vld [vmem:[%s0 + $0x20] sm:$0xff]
    %v36 = vld [vmem:[%s0 + $0x28] sm:$0xff]
    %v37 = vld [vmem:[%s0 + $0x30] sm:$0xff]
    %v38 = vld [vmem:[%s0 + $0x38] sm:$0xff]
    %v39 = vld [vmem:[%s0 + $0x40] sm:$0xff]
    %v40 = vld [vmem:[%s0 + $0x48] sm:$0xff]
    %v41 = vld [vmem:[%s0 + $0x50] sm:$0xff]
    %v42 = vld [vmem:[%s0 + $0x58] sm:$0xff]
    %v43 = vld [vmem:[%s0 + $0x60] sm:$0xff]
    %v44 = vld [vmem:[%s0 + $0x68] sm:$0xff]
    %v45 = vld [vmem:[%s0 + $0x70] sm:$0xff]
    %v46 = vld [vmem:[%s0 + $0x78] sm:$0xff]
    %47 = vxpose.xlu0.b32.start [1/16] %v31, 128
    %48 = vxpose.xlu0.b32.cont [2/16] %v32, 128
    %49 = vxpose.xlu0.b32.cont [3/16] %v33, 128
    %50 = vxpose.xlu0.b32.cont [4/16] %v34, 128
    %51 = vxpose.xlu0.b32.cont [5/16] %v35, 128
    %52 = vxpose.xlu0.b32.cont [6/16] %v36, 128
    %53 = vxpose.xlu0.b32.cont [7/16] %v37, 128
    %54 = vxpose.xlu0.b32.cont [8/16] %v38, 128
    %55 = vxpose.xlu0.b32.cont [9/16] %v39, 128
    %56 = vxpose.xlu0.b32.cont [10/16] %v40, 128
    %57 = vxpose.xlu0.b32.cont [11/16] %v41, 128
    %58 = vxpose.xlu0.b32.cont [12/16] %v42, 128
    %59 = vxpose.xlu0.b32.cont [13/16] %v43, 128
    %60 = vxpose.xlu0.b32.cont [14/16] %v44, 128
    %61 = vxpose.xlu0.b32.cont [15/16] %v45, 128
    %62 = vxpose.xlu0.b32.end [16/16] %v46, 128
    %v63 = vpop.trf.xlu0
    %v64 = vpop.trf.xlu0
    %v65 = vpop.trf.xlu0
    %v66 = vpop.trf.xlu0
    %v67 = vpop.trf.xlu0
    %v68 = vpop.trf.xlu0
    %v69 = vpop.trf.xlu0
    %v70 = vpop.trf.xlu0
    %v71 = vpop.trf.xlu0
    %v72 = vpop.trf.xlu0
    %v73 = vpop.trf.xlu0
    %v74 = vpop.trf.xlu0
    %v75 = vpop.trf.xlu0
    %v76 = vpop.trf.xlu0
    %v77 = vpop.trf.xlu0
    %v78 = vpop.trf.xlu0
    %v79 = vld [vmem:[%s1] sm:$0xff]
    %v80 = vld [vmem:[%s1 + $0x8] sm:$0xff]
    %v81 = vld [vmem:[%s1 + $0x10] sm:$0xff]
    %v82 = vld [vmem:[%s1 + $0x18] sm:$0xff]
    %v83 = vld [vmem:[%s1 + $0x20] sm:$0xff]
    %v84 = vld [vmem:[%s1 + $0x28] sm:$0xff]
    %v85 = vld [vmem:[%s1 + $0x30] sm:$0xff]
    %v86 = vld [vmem:[%s1 + $0x38] sm:$0xff]
    %v87 = vld [vmem:[%s1 + $0x40] sm:$0xff]
    %v88 = vld [vmem:[%s1 + $0x48] sm:$0xff]
    %v89 = vld [vmem:[%s1 + $0x50] sm:$0xff]
    %v90 = vld [vmem:[%s1 + $0x58] sm:$0xff]
    %v91 = vld [vmem:[%s1 + $0x60] sm:$0xff]
    %v92 = vld [vmem:[%s1 + $0x68] sm:$0xff]
    %v93 = vld [vmem:[%s1 + $0x70] sm:$0xff]
    %v94 = vld [vmem:[%s1 + $0x78] sm:$0xff]
    %95 = vxpose.xlu0.b32.start [1/16] %v79, 128
    %96 = vxpose.xlu0.b32.cont [2/16] %v80, 128
    %97 = vxpose.xlu0.b32.cont [3/16] %v81, 128
    %98 = vxpose.xlu0.b32.cont [4/16] %v82, 128
    %99 = vxpose.xlu0.b32.cont [5/16] %v83, 128
    %100 = vxpose.xlu0.b32.cont [6/16] %v84, 128
    %101 = vxpose.xlu0.b32.cont [7/16] %v85, 128
    %102 = vxpose.xlu0.b32.cont [8/16] %v86, 128
    %103 = vxpose.xlu0.b32.cont [9/16] %v87, 128
    %104 = vxpose.xlu0.b32.cont [10/16] %v88, 128
    %105 = vxpose.xlu0.b32.cont [11/16] %v89, 128
    %106 = vxpose.xlu0.b32.cont [12/16] %v90, 128
    %107 = vxpose.xlu0.b32.cont [13/16] %v91, 128
    %108 = vxpose.xlu0.b32.cont [14/16] %v92, 128
    %109 = vxpose.xlu0.b32.cont [15/16] %v93, 128
    %110 = vxpose.xlu0.b32.end [16/16] %v94, 128
    %v111 = vpop.trf.xlu0
    %v112 = vpop.trf.xlu0
    %v113 = vpop.trf.xlu0
    %v114 = vpop.trf.xlu0
    %v115 = vpop.trf.xlu0
    %v116 = vpop.trf.xlu0
    %v117 = vpop.trf.xlu0
    %v118 = vpop.trf.xlu0
    %v119 = vpop.trf.xlu0
    %v120 = vpop.trf.xlu0
    %v121 = vpop.trf.xlu0
    %v122 = vpop.trf.xlu0
    %v123 = vpop.trf.xlu0
    %v124 = vpop.trf.xlu0
    %v125 = vpop.trf.xlu0
    %v126 = vpop.trf.xlu0
    %v127 = vld [vmem:[%s2] sm:$0xf]
    %v128 = vld [vmem:[%s2 + $0x4] sm:$0xf]
    %v129 = vld [vmem:[%s2 + $0x8] sm:$0xf]
    %v130 = vld [vmem:[%s2 + $0xc] sm:$0xf]
    %v131 = vld [vmem:[%s4] sm:$0xff]
    %v132 = vld [vmem:[%s4 + $0x8] sm:$0xff]
    %v133 = vld [vmem:[%s4 + $0x10] sm:$0xff]
    %v134 = vld [vmem:[%s4 + $0x18] sm:$0xff]
    %v135 = vld [vmem:[%s3] sm:$0xf]
    %v136 = vld [vmem:[%s3 + $0x4] sm:$0xf]
    %v137 = vld [vmem:[%s5] sm:$0xff]
    %v138 = vld [vmem:[%s5 + $0x8] sm:$0xff]
    %v139 = vpack.c.bf16 %v111, %v63
    %141 = vset.pattern.permute.xlu0 0
    %142 = vperm.xlu0 %141, %v131
    %v143 = vpop.permute.xlu0 %142
    %146 = vset.pattern.permute.xlu0 0
    %147 = vperm.xlu0 %146, %v132
    %v148 = vpop.permute.xlu0 %147
    %151 = vset.pattern.permute.xlu0 0
    %152 = vperm.xlu0 %151, %v133
    %v153 = vpop.permute.xlu0 %152
    %156 = vset.pattern.permute.xlu0 0
    %157 = vperm.xlu0 %156, %v134
    %v158 = vpop.permute.xlu0 %157
    %v164 = vunpack.c.l.b16 %v127
    %v165 = vunpack.c.l.b16 %v128
    %v166 = vunpack.c.l.b16 %v129
    %v167 = vunpack.c.l.b16 %v130
    %v168 = vpack.c.b16 %v165, %v164
    %v169 = vpack.c.b16 %v167, %v166
    %vm170 = vcmask 130048
    %v172 = vsel %vm170, %v168, 0
    %v175 = vsel %vm170, %v169, 0
    %177 = vmatprep.subr.bf16.mxu0 0
    %178 = vmatpush1.bf16.msra.mxu0 0
    %179 = vmatprep.subr.bf16.mxu0 0
    %180 = vmatpush1.bf16.msra.mxu0 0
    %181 = vmatprep.subr.bf16.mxu0 0
    %182 = vmatpush1.bf16.msra.mxu0 0
    %183 = vmatprep.subr.bf16.mxu0 0
    %184 = vmatpush1.bf16.msra.mxu0 0
    %185 = vmatprep.subr.bf16.mxu0 0
    %186 = vmatpush1.bf16.msra.mxu0 0
    %187 = vmatprep.subr.bf16.mxu0 0
    %188 = vmatpush1.bf16.msra.mxu0 0
    %189 = vmatprep.subr.bf16.mxu0 0
    %190 = vmatpush1.bf16.msra.mxu0 0
    %191 = vmatprep.subr.bf16.mxu0 0
    %192 = vmatpush1.bf16.msra.mxu0 %v139
    %193 = vmatprep.subr.bf16.mxu0 0
    %194 = vmatpush2.bf16.msra.mxu0 0
    %195 = vmatprep.subr.bf16.mxu0 0
    %196 = vmatpush2.bf16.msra.mxu0 0
    %197 = vmatprep.subr.bf16.mxu0 0
    %198 = vmatpush2.bf16.msra.mxu0 0
    %199 = vmatprep.subr.bf16.mxu0 0
    %200 = vmatpush2.bf16.msra.mxu0 0
    %201 = vmatprep.subr.bf16.mxu0 0
    %202 = vmatpush2.bf16.msra.mxu0 0
    %203 = vmatprep.subr.bf16.mxu0 0
    %204 = vmatpush2.bf16.msra.mxu0 0
    %205 = vmatprep.subr.bf16.mxu0 0
    %206 = vmatpush2.bf16.msra.mxu0 0
    %207 = vmatprep.subr.bf16.mxu0 0
    %208 = vmatpush2.bf16.msra.mxu0 0
    %209 = vmatprep.mubr.bf16.mxu0 0
    %210 = vmatmul.mubr.bf16.gmra.mxu0 %v172
    %v211 = vpop.f32.mrf.mxu0
    %v212 = vadd.f32 %v143, %v211
    %v213 = vpop.f32.mrf.mxu0
    %v214 = vpop.f32.mrf.mxu0
    %v215 = vadd.f32 %v148, %v214
    %v216 = vpop.f32.mrf.mxu0
    %217 = vmatprep.mubr.bf16.mxu0 0
    %218 = vmatmul.mubr.bf16.gmra.mxu0 %v175
    %v219 = vpop.f32.mrf.mxu0
    %v220 = vadd.f32 %v153, %v219
    %v221 = vpop.f32.mrf.mxu0
    %v222 = vpop.f32.mrf.mxu0
    %v223 = vadd.f32 %v158, %v222
    %v224 = vpop.f32.mrf.mxu0
    %225 = vdwg.mxu0
    %v226 = vmax.f32 %v212, 0.0
    %v227 = vmax.f32 %v215, 0.0
    %v228 = vmax.f32 %v220, 0.0
    %v229 = vmax.f32 %v223, 0.0
    %v230 = vpack.c.bf16 %v227, %v226
    %v231 = vpack.c.bf16 %v229, %v228
    %233 = vset.pattern.permute.xlu0 0
    %234 = vperm.xlu0 %233, %v137
    %v235 = vpop.permute.xlu0 %234
    %238 = vset.pattern.permute.xlu0 0
    %239 = vperm.xlu0 %238, %v138
    %v240 = vpop.permute.xlu0 %239
    %v244 = vunpack.c.l.b16 %v135
    %v245 = vunpack.c.l.b16 %v136
    %v246 = vpack.c.b16 %v245, %v244
    %vm247 = vcmask 261120
    %v249 = vsel %vm247, %v246, 0
    %251 = vmatprep.subr.bf16.mxu0 0
    %252 = vmatpush1.bf16.msra.mxu0 0
    %253 = vmatprep.subr.bf16.mxu0 0
    %254 = vmatpush1.bf16.msra.mxu0 0
    %255 = vmatprep.subr.bf16.mxu0 0
    %256 = vmatpush1.bf16.msra.mxu0 0
    %257 = vmatprep.subr.bf16.mxu0 0
    %258 = vmatpush1.bf16.msra.mxu0 0
    %259 = vmatprep.subr.bf16.mxu0 0
    %260 = vmatpush1.bf16.msra.mxu0 0
    %261 = vmatprep.subr.bf16.mxu0 0
    %262 = vmatpush1.bf16.msra.mxu0 0
    %263 = vmatprep.subr.bf16.mxu0 0
    %264 = vmatpush1.bf16.msra.mxu0 %v231
    %265 = vmatprep.subr.bf16.mxu0 0
    %266 = vmatpush1.bf16.msra.mxu0 %v230
    %267 = vmatprep.subr.bf16.mxu0 0
    %268 = vmatpush2.bf16.msra.mxu0 0
    %269 = vmatprep.subr.bf16.mxu0 0
    %270 = vmatpush2.bf16.msra.mxu0 0
    %271 = vmatprep.subr.bf16.mxu0 0
    %272 = vmatpush2.bf16.msra.mxu0 0
    %273 = vmatprep.subr.bf16.mxu0 0
    %274 = vmatpush2.bf16.msra.mxu0 0
    %275 = vmatprep.subr.bf16.mxu0 0
    %276 = vmatpush2.bf16.msra.mxu0 0
    %277 = vmatprep.subr.bf16.mxu0 0
    %278 = vmatpush2.bf16.msra.mxu0 0
    %279 = vmatprep.subr.bf16.mxu0 0
    %280 = vmatpush2.bf16.msra.mxu0 0
    %281 = vmatprep.subr.bf16.mxu0 0
    %282 = vmatpush2.bf16.msra.mxu0 0
    %283 = vmatprep.mubr.bf16.mxu0 0
    %284 = vmatmul.mubr.bf16.gmra.mxu0 %v249
    %v285 = vpop.f32.mrf.mxu0
    %v286 = vadd.f32 %v235, %v285
    %v287 = vpop.f32.mrf.mxu0
    %v288 = vpop.f32.mrf.mxu0
    %v289 = vadd.f32 %v240, %v288
    %v290 = vpop.f32.mrf.mxu0
    %291 = vdwg.mxu0
    %s292 = scalar_lea.vmem %s2, 16
    %v293 = vld [vmem:[%s292] sm:$0xf]
    %v294 = vld [vmem:[%s292 + $0x4] sm:$0xf]
    %v295 = vld [vmem:[%s292 + $0x8] sm:$0xf]
    %v296 = vld [vmem:[%s292 + $0xc] sm:$0xf]
    %s297 = scalar_lea.vmem %s3, 8
    %v298 = vld [vmem:[%s297] sm:$0xf]
    %v299 = vld [vmem:[%s297 + $0x4] sm:$0xf]
    %v300 = vpack.c.bf16 %v289, %v286
    %301 = vset.pattern.permute.xlu0 1
    %302 = vperm.xlu0 %301, %v131
    %v303 = vpop.permute.xlu0 %302
    %305 = vset.pattern.permute.xlu0 1
    %306 = vperm.xlu0 %305, %v132
    %v307 = vpop.permute.xlu0 %306
    %309 = vset.pattern.permute.xlu0 1
    %310 = vperm.xlu0 %309, %v133
    %v311 = vpop.permute.xlu0 %310
    %313 = vset.pattern.permute.xlu0 1
    %314 = vperm.xlu0 %313, %v134
    %v315 = vpop.permute.xlu0 %314
    %v321 = vunpack.c.l.b16 %v293
    %v322 = vunpack.c.l.b16 %v294
    %v323 = vunpack.c.l.b16 %v295
    %v324 = vunpack.c.l.b16 %v296
    %v325 = vpack.c.b16 %v322, %v321
    %v326 = vpack.c.b16 %v324, %v323
    %v328 = vsel %vm170, %v325, 0
    %v331 = vsel %vm170, %v326, 0
    %333 = vmatprep.subr.bf16.mxu0 0
    %334 = vmatpush1.bf16.msra.mxu0 0
    %335 = vmatprep.subr.bf16.mxu0 0
    %336 = vmatpush1.bf16.msra.mxu0 0
    %337 = vmatprep.subr.bf16.mxu0 0
    %338 = vmatpush1.bf16.msra.mxu0 0
    %339 = vmatprep.subr.bf16.mxu0 0
    %340 = vmatpush1.bf16.msra.mxu0 0
    %341 = vmatprep.subr.bf16.mxu0 0
    %342 = vmatpush1.bf16.msra.mxu0 0
    %343 = vmatprep.subr.bf16.mxu0 0
    %344 = vmatpush1.bf16.msra.mxu0 0
    %345 = vmatprep.subr.bf16.mxu0 0
    %346 = vmatpush1.bf16.msra.mxu0 0
    %347 = vmatprep.subr.bf16.mxu0 0
    %348 = vmatpush1.bf16.msra.mxu0 %v300
    %349 = vmatprep.subr.bf16.mxu0 0
    %350 = vmatpush2.bf16.msra.mxu0 0
    %351 = vmatprep.subr.bf16.mxu0 0
    %352 = vmatpush2.bf16.msra.mxu0 0
    %353 = vmatprep.subr.bf16.mxu0 0
    %354 = vmatpush2.bf16.msra.mxu0 0
    %355 = vmatprep.subr.bf16.mxu0 0
    %356 = vmatpush2.bf16.msra.mxu0 0
    %357 = vmatprep.subr.bf16.mxu0 0
    %358 = vmatpush2.bf16.msra.mxu0 0
    %359 = vmatprep.subr.bf16.mxu0 0
    %360 = vmatpush2.bf16.msra.mxu0 0
    %361 = vmatprep.subr.bf16.mxu0 0
    %362 = vmatpush2.bf16.msra.mxu0 0
    %363 = vmatprep.subr.bf16.mxu0 0
    %364 = vmatpush2.bf16.msra.mxu0 0
    %365 = vmatprep.mubr.bf16.mxu0 0
    %366 = vmatmul.mubr.bf16.gmra.mxu0 %v328
    %v367 = vpop.f32.mrf.mxu0
    %v368 = vadd.f32 %v303, %v367
    %v369 = vpop.f32.mrf.mxu0
    %v370 = vpop.f32.mrf.mxu0
    %v371 = vadd.f32 %v307, %v370
    %v372 = vpop.f32.mrf.mxu0
    %373 = vmatprep.mubr.bf16.mxu0 0
    %374 = vmatmul.mubr.bf16.gmra.mxu0 %v331
    %v375 = vpop.f32.mrf.mxu0
    %v376 = vadd.f32 %v311, %v375
    %v377 = vpop.f32.mrf.mxu0
    %v378 = vpop.f32.mrf.mxu0
    %v379 = vadd.f32 %v315, %v378
    %v380 = vpop.f32.mrf.mxu0
    %381 = vdwg.mxu0
    %v382 = vmax.f32 %v368, 0.0
    %v383 = vmax.f32 %v371, 0.0
    %v384 = vmax.f32 %v376, 0.0
    %v385 = vmax.f32 %v379, 0.0
    %v386 = vpack.c.bf16 %v383, %v382
    %v387 = vpack.c.bf16 %v385, %v384
    %388 = vset.pattern.permute.xlu0 1
    %389 = vperm.xlu0 %388, %v137
    %v390 = vpop.permute.xlu0 %389
    %392 = vset.pattern.permute.xlu0 1
    %393 = vperm.xlu0 %392, %v138
    %v394 = vpop.permute.xlu0 %393
    %v398 = vunpack.c.l.b16 %v298
    %v399 = vunpack.c.l.b16 %v299
    %v400 = vpack.c.b16 %v399, %v398
    %v402 = vsel %vm247, %v400, 0
    %404 = vmatprep.subr.bf16.mxu0 0
    %405 = vmatpush1.bf16.msra.mxu0 0
    %406 = vmatprep.subr.bf16.mxu0 0
    %407 = vmatpush1.bf16.msra.mxu0 0
    %408 = vmatprep.subr.bf16.mxu0 0
    %409 = vmatpush1.bf16.msra.mxu0 0
    %410 = vmatprep.subr.bf16.mxu0 0
    %411 = vmatpush1.bf16.msra.mxu0 0
    %412 = vmatprep.subr.bf16.mxu0 0
    %413 = vmatpush1.bf16.msra.mxu0 0
    %414 = vmatprep.subr.bf16.mxu0 0
    %415 = vmatpush1.bf16.msra.mxu0 0
    %416 = vmatprep.subr.bf16.mxu0 0
    %417 = vmatpush1.bf16.msra.mxu0 %v387
    %418 = vmatprep.subr.bf16.mxu0 0
    %419 = vmatpush1.bf16.msra.mxu0 %v386
    %420 = vmatprep.subr.bf16.mxu0 0
    %421 = vmatpush2.bf16.msra.mxu0 0
    %422 = vmatprep.subr.bf16.mxu0 0
    %423 = vmatpush2.bf16.msra.mxu0 0
    %424 = vmatprep.subr.bf16.mxu0 0
    %425 = vmatpush2.bf16.msra.mxu0 0
    %426 = vmatprep.subr.bf16.mxu0 0
    %427 = vmatpush2.bf16.msra.mxu0 0
    %428 = vmatprep.subr.bf16.mxu0 0
    %429 = vmatpush2.bf16.msra.mxu0 0
    %430 = vmatprep.subr.bf16.mxu0 0
    %431 = vmatpush2.bf16.msra.mxu0 0
    %432 = vmatprep.subr.bf16.mxu0 0
    %433 = vmatpush2.bf16.msra.mxu0 0
    %434 = vmatprep.subr.bf16.mxu0 0
    %435 = vmatpush2.bf16.msra.mxu0 0
    %436 = vmatprep.mubr.bf16.mxu0 0
    %437 = vmatmul.mubr.bf16.gmra.mxu0 %v402
    %v438 = vpop.f32.mrf.mxu0
    %v439 = vadd.f32 %v390, %v438
    %v440 = vpop.f32.mrf.mxu0
    %v441 = vpop.f32.mrf.mxu0
    %v442 = vadd.f32 %v394, %v441
    %v443 = vpop.f32.mrf.mxu0
    %444 = vdwg.mxu0
    %v445 = vadd.f32 %v63, %v439
    %v446 = vadd.f32 %v111, %v442
    %s447 = scalar_lea.vmem %s2, 32
    %v448 = vld [vmem:[%s447] sm:$0xf]
    %v449 = vld [vmem:[%s447 + $0x4] sm:$0xf]
    %v450 = vld [vmem:[%s447 + $0x8] sm:$0xf]
    %v451 = vld [vmem:[%s447 + $0xc] sm:$0xf]
    %s452 = scalar_lea.vmem %s3, 16
    %v453 = vld [vmem:[%s452] sm:$0xf]
    %v454 = vld [vmem:[%s452 + $0x4] sm:$0xf]
    %v455 = vpack.c.bf16 %v446, %v445
    %456 = vset.pattern.permute.xlu0 2
    %457 = vperm.xlu0 %456, %v131
    %v458 = vpop.permute.xlu0 %457
    %460 = vset.pattern.permute.xlu0 2
    %461 = vperm.xlu0 %460, %v132
    %v462 = vpop.permute.xlu0 %461
    %464 = vset.pattern.permute.xlu0 2
    %465 = vperm.xlu0 %464, %v133
    %v466 = vpop.permute.xlu0 %465
    %468 = vset.pattern.permute.xlu0 2
    %469 = vperm.xlu0 %468, %v134
    %v470 = vpop.permute.xlu0 %469
    %v476 = vunpack.c.l.b16 %v448
    %v477 = vunpack.c.l.b16 %v449
    %v478 = vunpack.c.l.b16 %v450
    %v479 = vunpack.c.l.b16 %v451
    %v480 = vpack.c.b16 %v477, %v476
    %v481 = vpack.c.b16 %v479, %v478
    %v483 = vsel %vm170, %v480, 0
    %v486 = vsel %vm170, %v481, 0
    %488 = vmatprep.subr.bf16.mxu0 0
    %489 = vmatpush1.bf16.msra.mxu0 0
    %490 = vmatprep.subr.bf16.mxu0 0
    %491 = vmatpush1.bf16.msra.mxu0 0
    %492 = vmatprep.subr.bf16.mxu0 0
    %493 = vmatpush1.bf16.msra.mxu0 0
    %494 = vmatprep.subr.bf16.mxu0 0
    %495 = vmatpush1.bf16.msra.mxu0 0
    %496 = vmatprep.subr.bf16.mxu0 0
    %497 = vmatpush1.bf16.msra.mxu0 0
    %498 = vmatprep.subr.bf16.mxu0 0
    %499 = vmatpush1.bf16.msra.mxu0 0
    %500 = vmatprep.subr.bf16.mxu0 0
    %501 = vmatpush1.bf16.msra.mxu0 0
    %502 = vmatprep.subr.bf16.mxu0 0
    %503 = vmatpush1.bf16.msra.mxu0 %v455
    %504 = vmatprep.subr.bf16.mxu0 0
    %505 = vmatpush2.bf16.msra.mxu0 0
    %506 = vmatprep.subr.bf16.mxu0 0
    %507 = vmatpush2.bf16.msra.mxu0 0
    %508 = vmatprep.subr.bf16.mxu0 0
    %509 = vmatpush2.bf16.msra.mxu0 0
    %510 = vmatprep.subr.bf16.mxu0 0
    %511 = vmatpush2.bf16.msra.mxu0 0
    %512 = vmatprep.subr.bf16.mxu0 0
    %513 = vmatpush2.bf16.msra.mxu0 0
    %514 = vmatprep.subr.bf16.mxu0 0
    %515 = vmatpush2.bf16.msra.mxu0 0
    %516 = vmatprep.subr.bf16.mxu0 0
    %517 = vmatpush2.bf16.msra.mxu0 0
    %518 = vmatprep.subr.bf16.mxu0 0
    %519 = vmatpush2.bf16.msra.mxu0 0
    %520 = vmatprep.mubr.bf16.mxu0 0
    %521 = vmatmul.mubr.bf16.gmra.mxu0 %v483
    %v522 = vpop.f32.mrf.mxu0
    %v523 = vadd.f32 %v458, %v522
    %v524 = vpop.f32.mrf.mxu0
    %v525 = vpop.f32.mrf.mxu0
    %v526 = vadd.f32 %v462, %v525
    %v527 = vpop.f32.mrf.mxu0
    %528 = vmatprep.mubr.bf16.mxu0 0
    %529 = vmatmul.mubr.bf16.gmra.mxu0 %v486
    %v530 = vpop.f32.mrf.mxu0
    %v531 = vadd.f32 %v466, %v530
    %v532 = vpop.f32.mrf.mxu0
    %v533 = vpop.f32.mrf.mxu0
    %v534 = vadd.f32 %v470, %v533
    %v535 = vpop.f32.mrf.mxu0
    %536 = vdwg.mxu0
    %v537 = vmax.f32 %v523, 0.0
    %v538 = vmax.f32 %v526, 0.0
    %v539 = vmax.f32 %v531, 0.0
    %v540 = vmax.f32 %v534, 0.0
    %v541 = vpack.c.bf16 %v538, %v537
    %v542 = vpack.c.bf16 %v540, %v539
    %543 = vset.pattern.permute.xlu0 2
    %544 = vperm.xlu0 %543, %v137
    %v545 = vpop.permute.xlu0 %544
    %547 = vset.pattern.permute.xlu0 2
    %548 = vperm.xlu0 %547, %v138
    %v549 = vpop.permute.xlu0 %548
    %v553 = vunpack.c.l.b16 %v453
    %v554 = vunpack.c.l.b16 %v454
    %v555 = vpack.c.b16 %v554, %v553
    %v557 = vsel %vm247, %v555, 0
    %559 = vmatprep.subr.bf16.mxu0 0
    %560 = vmatpush1.bf16.msra.mxu0 0
    %561 = vmatprep.subr.bf16.mxu0 0
    %562 = vmatpush1.bf16.msra.mxu0 0
    %563 = vmatprep.subr.bf16.mxu0 0
    %564 = vmatpush1.bf16.msra.mxu0 0
    %565 = vmatprep.subr.bf16.mxu0 0
    %566 = vmatpush1.bf16.msra.mxu0 0
    %567 = vmatprep.subr.bf16.mxu0 0
    %568 = vmatpush1.bf16.msra.mxu0 0
    %569 = vmatprep.subr.bf16.mxu0 0
    %570 = vmatpush1.bf16.msra.mxu0 0
    %571 = vmatprep.subr.bf16.mxu0 0
    %572 = vmatpush1.bf16.msra.mxu0 %v542
    %573 = vmatprep.subr.bf16.mxu0 0
    %574 = vmatpush1.bf16.msra.mxu0 %v541
    %575 = vmatprep.subr.bf16.mxu0 0
    %576 = vmatpush2.bf16.msra.mxu0 0
    %577 = vmatprep.subr.bf16.mxu0 0
    %578 = vmatpush2.bf16.msra.mxu0 0
    %579 = vmatprep.subr.bf16.mxu0 0
    %580 = vmatpush2.bf16.msra.mxu0 0
    %581 = vmatprep.subr.bf16.mxu0 0
    %582 = vmatpush2.bf16.msra.mxu0 0
    %583 = vmatprep.subr.bf16.mxu0 0
    %584 = vmatpush2.bf16.msra.mxu0 0
    %585 = vmatprep.subr.bf16.mxu0 0
    %586 = vmatpush2.bf16.msra.mxu0 0
    %587 = vmatprep.subr.bf16.mxu0 0
    %588 = vmatpush2.bf16.msra.mxu0 0
    %589 = vmatprep.subr.bf16.mxu0 0
    %590 = vmatpush2.bf16.msra.mxu0 0
    %591 = vmatprep.mubr.bf16.mxu0 0
    %592 = vmatmul.mubr.bf16.gmra.mxu0 %v557
    %v593 = vpop.f32.mrf.mxu0
    %v594 = vadd.f32 %v545, %v593
    %v595 = vpop.f32.mrf.mxu0
    %v596 = vpop.f32.mrf.mxu0
    %v597 = vadd.f32 %v549, %v596
    %v598 = vpop.f32.mrf.mxu0
    %599 = vdwg.mxu0
    %s600 = scalar_lea.vmem %s2, 48
    %v601 = vld [vmem:[%s600] sm:$0xf]
    %v602 = vld [vmem:[%s600 + $0x4] sm:$0xf]
    %v603 = vld [vmem:[%s600 + $0x8] sm:$0xf]
    %v604 = vld [vmem:[%s600 + $0xc] sm:$0xf]
    %s605 = scalar_lea.vmem %s3, 24
    %v606 = vld [vmem:[%s605] sm:$0xf]
    %v607 = vld [vmem:[%s605 + $0x4] sm:$0xf]
    %v608 = vpack.c.bf16 %v597, %v594
    %609 = vset.pattern.permute.xlu0 3
    %610 = vperm.xlu0 %609, %v131
    %v611 = vpop.permute.xlu0 %610
    %613 = vset.pattern.permute.xlu0 3
    %614 = vperm.xlu0 %613, %v132
    %v615 = vpop.permute.xlu0 %614
    %617 = vset.pattern.permute.xlu0 3
    %618 = vperm.xlu0 %617, %v133
    %v619 = vpop.permute.xlu0 %618
    %621 = vset.pattern.permute.xlu0 3
    %622 = vperm.xlu0 %621, %v134
    %v623 = vpop.permute.xlu0 %622
    %v629 = vunpack.c.l.b16 %v601
    %v630 = vunpack.c.l.b16 %v602
    %v631 = vunpack.c.l.b16 %v603
    %v632 = vunpack.c.l.b16 %v604
    %v633 = vpack.c.b16 %v630, %v629
    %v634 = vpack.c.b16 %v632, %v631
    %v636 = vsel %vm170, %v633, 0
    %v639 = vsel %vm170, %v634, 0
    %641 = vmatprep.subr.bf16.mxu0 0
    %642 = vmatpush1.bf16.msra.mxu0 0
    %643 = vmatprep.subr.bf16.mxu0 0
    %644 = vmatpush1.bf16.msra.mxu0 0
    %645 = vmatprep.subr.bf16.mxu0 0
    %646 = vmatpush1.bf16.msra.mxu0 0
    %647 = vmatprep.subr.bf16.mxu0 0
    %648 = vmatpush1.bf16.msra.mxu0 0
    %649 = vmatprep.subr.bf16.mxu0 0
    %650 = vmatpush1.bf16.msra.mxu0 0
    %651 = vmatprep.subr.bf16.mxu0 0
    %652 = vmatpush1.bf16.msra.mxu0 0
    %653 = vmatprep.subr.bf16.mxu0 0
    %654 = vmatpush1.bf16.msra.mxu0 0
    %655 = vmatprep.subr.bf16.mxu0 0
    %656 = vmatpush1.bf16.msra.mxu0 %v608
    %657 = vmatprep.subr.bf16.mxu0 0
    %658 = vmatpush2.bf16.msra.mxu0 0
    %659 = vmatprep.subr.bf16.mxu0 0
    %660 = vmatpush2.bf16.msra.mxu0 0
    %661 = vmatprep.subr.bf16.mxu0 0
    %662 = vmatpush2.bf16.msra.mxu0 0
    %663 = vmatprep.subr.bf16.mxu0 0
    %664 = vmatpush2.bf16.msra.mxu0 0
    %665 = vmatprep.subr.bf16.mxu0 0
    %666 = vmatpush2.bf16.msra.mxu0 0
    %667 = vmatprep.subr.bf16.mxu0 0
    %668 = vmatpush2.bf16.msra.mxu0 0
    %669 = vmatprep.subr.bf16.mxu0 0
    %670 = vmatpush2.bf16.msra.mxu0 0
    %671 = vmatprep.subr.bf16.mxu0 0
    %672 = vmatpush2.bf16.msra.mxu0 0
    %673 = vmatprep.mubr.bf16.mxu0 0
    %674 = vmatmul.mubr.bf16.gmra.mxu0 %v636
    %v675 = vpop.f32.mrf.mxu0
    %v676 = vadd.f32 %v611, %v675
    %v677 = vpop.f32.mrf.mxu0
    %v678 = vpop.f32.mrf.mxu0
    %v679 = vadd.f32 %v615, %v678
    %v680 = vpop.f32.mrf.mxu0
    %681 = vmatprep.mubr.bf16.mxu0 0
    %682 = vmatmul.mubr.bf16.gmra.mxu0 %v639
    %v683 = vpop.f32.mrf.mxu0
    %v684 = vadd.f32 %v619, %v683
    %v685 = vpop.f32.mrf.mxu0
    %v686 = vpop.f32.mrf.mxu0
    %v687 = vadd.f32 %v623, %v686
    %v688 = vpop.f32.mrf.mxu0
    %689 = vdwg.mxu0
    %v690 = vmax.f32 %v676, 0.0
    %v691 = vmax.f32 %v679, 0.0
    %v692 = vmax.f32 %v684, 0.0
    %v693 = vmax.f32 %v687, 0.0
    %v694 = vpack.c.bf16 %v691, %v690
    %v695 = vpack.c.bf16 %v693, %v692
    %696 = vset.pattern.permute.xlu0 3
    %697 = vperm.xlu0 %696, %v137
    %v698 = vpop.permute.xlu0 %697
    %700 = vset.pattern.permute.xlu0 3
    %701 = vperm.xlu0 %700, %v138
    %v702 = vpop.permute.xlu0 %701
    %v706 = vunpack.c.l.b16 %v606
    %v707 = vunpack.c.l.b16 %v607
    %v708 = vpack.c.b16 %v707, %v706
    %v710 = vsel %vm247, %v708, 0
    %712 = vmatprep.subr.bf16.mxu0 0
    %713 = vmatpush1.bf16.msra.mxu0 0
    %714 = vmatprep.subr.bf16.mxu0 0
    %715 = vmatpush1.bf16.msra.mxu0 0
    %716 = vmatprep.subr.bf16.mxu0 0
    %717 = vmatpush1.bf16.msra.mxu0 0
    %718 = vmatprep.subr.bf16.mxu0 0
    %719 = vmatpush1.bf16.msra.mxu0 0
    %720 = vmatprep.subr.bf16.mxu0 0
    %721 = vmatpush1.bf16.msra.mxu0 0
    %722 = vmatprep.subr.bf16.mxu0 0
    %723 = vmatpush1.bf16.msra.mxu0 0
    %724 = vmatprep.subr.bf16.mxu0 0
    %725 = vmatpush1.bf16.msra.mxu0 %v695
    %726 = vmatprep.subr.bf16.mxu0 0
    %727 = vmatpush1.bf16.msra.mxu0 %v694
    %728 = vmatprep.subr.bf16.mxu0 0
    %729 = vmatpush2.bf16.msra.mxu0 0
    %730 = vmatprep.subr.bf16.mxu0 0
    %731 = vmatpush2.bf16.msra.mxu0 0
    %732 = vmatprep.subr.bf16.mxu0 0
    %733 = vmatpush2.bf16.msra.mxu0 0
    %734 = vmatprep.subr.bf16.mxu0 0
    %735 = vmatpush2.bf16.msra.mxu0 0
    %736 = vmatprep.subr.bf16.mxu0 0
    %737 = vmatpush2.bf16.msra.mxu0 0
    %738 = vmatprep.subr.bf16.mxu0 0
    %739 = vmatpush2.bf16.msra.mxu0 0
    %740 = vmatprep.subr.bf16.mxu0 0
    %741 = vmatpush2.bf16.msra.mxu0 0
    %742 = vmatprep.subr.bf16.mxu0 0
    %743 = vmatpush2.bf16.msra.mxu0 0
    %744 = vmatprep.mubr.bf16.mxu0 0
    %745 = vmatmul.mubr.bf16.gmra.mxu0 %v710
    %v746 = vpop.f32.mrf.mxu0
    %v747 = vadd.f32 %v698, %v746
    %v748 = vpop.f32.mrf.mxu0
    %v749 = vpop.f32.mrf.mxu0
    %v750 = vadd.f32 %v702, %v749
    %v751 = vpop.f32.mrf.mxu0
    %752 = vdwg.mxu0
    %v753 = vadd.f32 %v445, %v747
    %v754 = vadd.f32 %v446, %v750
    %v755 = vld [vmem:[%s6] sm:$0xf]
    %v756 = vpack.c.bf16 %v754, %v753
    %v757 = vld [vmem:[%s7] sm:$0xff]
    %759 = vset.pattern.permute.xlu0 0
    %760 = vperm.xlu0 %759, %v757
    %v761 = vpop.permute.xlu0 %760
    %v764 = vsel %vm170, %v755, 0
    %766 = vmatprep.subr.bf16.mxu0 0
    %767 = vmatpush1.bf16.msra.mxu0 0
    %768 = vmatprep.subr.bf16.mxu0 0
    %769 = vmatpush1.bf16.msra.mxu0 0
    %770 = vmatprep.subr.bf16.mxu0 0
    %771 = vmatpush1.bf16.msra.mxu0 0
    %772 = vmatprep.subr.bf16.mxu0 0
    %773 = vmatpush1.bf16.msra.mxu0 0
    %774 = vmatprep.subr.bf16.mxu0 0
    %775 = vmatpush1.bf16.msra.mxu0 0
    %776 = vmatprep.subr.bf16.mxu0 0
    %777 = vmatpush1.bf16.msra.mxu0 0
    %778 = vmatprep.subr.bf16.mxu0 0
    %779 = vmatpush1.bf16.msra.mxu0 0
    %780 = vmatprep.subr.bf16.mxu0 0
    %781 = vmatpush1.bf16.msra.mxu0 %v756
    %782 = vmatprep.subr.bf16.mxu0 0
    %783 = vmatpush2.bf16.msra.mxu0 0
    %784 = vmatprep.subr.bf16.mxu0 0
    %785 = vmatpush2.bf16.msra.mxu0 0
    %786 = vmatprep.subr.bf16.mxu0 0
    %787 = vmatpush2.bf16.msra.mxu0 0
    %788 = vmatprep.subr.bf16.mxu0 0
    %789 = vmatpush2.bf16.msra.mxu0 0
    %790 = vmatprep.subr.bf16.mxu0 0
    %791 = vmatpush2.bf16.msra.mxu0 0
    %792 = vmatprep.subr.bf16.mxu0 0
    %793 = vmatpush2.bf16.msra.mxu0 0
    %794 = vmatprep.subr.bf16.mxu0 0
    %795 = vmatpush2.bf16.msra.mxu0 0
    %796 = vmatprep.subr.bf16.mxu0 0
    %797 = vmatpush2.bf16.msra.mxu0 0
    %798 = vmatprep.mubr.bf16.mxu0 0
    %799 = vmatmul.mubr.bf16.gmra.mxu0 %v764
    %v800 = vpop.f32.mrf.mxu0
    %v801 = vadd.f32 %v761, %v800
    %v802 = vpop.f32.mrf.mxu0
    %v803 = vpop.f32.mrf.mxu0
    %v804 = vpop.f32.mrf.mxu0
    %805 = vdwg.mxu0
    %v806 = vmul.f32 %v801, %v111
    %vm807 = vcmp.eq.f32.partialorder %v806, 0.0
    %v808 = vsel %vm807, -1e+20, %v806
    %809 = vst [vmem:[#allocation2] sm:$0xff] %v808
    // Predicated region
    $region34: #{tpu_custom_call.1} parent=1 // pred_check
      _
    $region35: #{tpu_custom_call.1} parent=1 // pred_check_branch
      %811 = sbr.rel (0) target = $region37
    $region36: #{tpu_custom_call.1} parent=1 // pred_region
      %s813 = ssub.s32 128, 128
      %814 = vsyncadd [#allocation3], %s813
      %s816 = sshll.u32 [#allocation2], 4
      %s817 = int_to_ptr.vmem [resolvable:$true] %s816
      %819 = dma.vmem_to_hbm [thread:$0]  %s817, 128, %s8, [#allocation3]
    $region37: #{tpu_custom_call.1} parent=1 // pred_fallthru
      _
    // Predicated region
    $region38: #{tpu_custom_call.1} parent=1 // pred_check
      _
    $region39: #{tpu_custom_call.1} parent=1 // pred_check_branch
      %821 = sbr.rel (0) target = $region41
    $region40: #{tpu_custom_call.1} parent=1 // pred_region
      %822 = dma.done [#allocation3], 128
    $region41: #{tpu_custom_call.1} parent=1 // pred_fallthru
      _
    %823 = vsyncpa [#allocation3], 1

</llo_original>
